<compile_context>
chip_gen: v7x
topology: tpu7x:2x2x1
jax: 0.10.0
libtpu: 0.0.40
codegen_flags: <defaults>
</compile_context>

<pallas_src>
import numpy as np
import jax
import jax.numpy as jnp
from jax.experimental import pallas as pl
from jax.experimental.pallas import tpu as pltpu

# ---- static problem sizes (small, consistent with the module) ----------------
QDIM = 3                       # generalized coordinates
UDIM = 2                       # external torques
HID = 32                       # hidden size of the three MLPs
BATCH = 8
PDIM = QDIM * (QDIM + 1) // 2  # Cholesky parameters per sample
L_BIAS = 2.0                   # bias added to the Cholesky diagonal (CholeskyMMNet)
# below-diagonal index order == np.tril_indices(QDIM, k=-1)
TRIL_IJ = [(i, j) for i in range(1, QDIM) for j in range(i)]
XDIM = 2 * QDIM + UDIM         # fused-MLP input width  [q | v | u]
ODIM = PDIM + 1 + QDIM         # fused-MLP output width [chol params | V | F]


# ==============================================================================
# Pallas kernel  (everything is (features, batch): batch lives in the lane axis)
# ==============================================================================
def rigid_body_kernel(x_ref,
                      w1_ref, b1_ref, w2_ref, b2_ref, w3_ref, b3_ref, seed_ref,
                      o_ref):
    f32 = jnp.float32
    x = x_ref[...]                                  # (XDIM, B): rows [q | v | u]
    B = x.shape[1]
    H, H2 = HID, 2 * HID

    def dotf(a, b):
        return jnp.dot(a, b, preferred_element_type=f32)

    # ---------------- layer 1: forward (tangent seeding is elementwise) -------
    a1 = jnp.tanh(dotf(w1_ref[...], x) + b1_ref[...])          # (3H, B)
    d1 = 1.0 - a1[0:H2] * a1[0:H2]                              # (2H, B) tanh' mass|pot
    seed = seed_ref[...]                                        # (2H, QDIM) compact seeds
    # tangent stream w.r.t. q_k, stacked along lanes (k-major blocks of width B)
    t1 = jnp.concatenate([d1 * seed[:, k:k + 1] for k in range(QDIM)], axis=1)
    zf = jnp.zeros((H, QDIM * B), f32)                          # zero force block

    # ------------- layer 2: forward + all tangents in ONE matmul --------------
    s1 = jnp.concatenate([a1, jnp.concatenate([t1, zf], axis=0)], axis=1)  # (3H, (1+Q)B)
    z2 = dotf(w2_ref[...], s1)                                  # (3H, (1+Q)B)
    a2 = jnp.tanh(z2[:, 0:B] + b2_ref[...])                     # (3H, B)
    d2 = 1.0 - a2[0:H2] * a2[0:H2]                              # (2H, B)
    t2 = jnp.concatenate(
        [d2 * z2[0:H2, (1 + k) * B:(2 + k) * B] for k in range(QDIM)], axis=1)

    # ------------- layer 3: forward + all tangents in ONE matmul --------------
    s2 = jnp.concatenate([a2, jnp.concatenate([t2, zf], axis=0)], axis=1)  # (3H, (1+Q)B)
    z3 = dotf(w3_ref[...], s2)                                  # (ODIM, (1+Q)B)
    out = z3[:, 0:B] + b3_ref[...]                              # (ODIM, B); +L_BIAS folded in
    J = z3[:, B:]                                               # tangent block (k-major)

    Lp = out[0:PDIM]                     # (PDIM, B) rows: [L00,L11,L22, L10,L20,L21]
    F = out[PDIM + 1:]                   # (QDIM, B) generalized force
    Jlp = J[0:PDIM]                      # (PDIM, QDIM*B): block k = d(chol params)/dq_k
    Gq = J[PDIM:PDIM + 1]                # (1, QDIM*B):    block k = dV/dq_k
    v = x[QDIM:2 * QDIM]                 # (QDIM, B)

    def row(A, r):
        return A[r:r + 1]                # (1, B) lane-dense slice

    def lower_mv(A, xs):                 # y = L x, L entries in the rows of A
        ys = [row(A, i) * xs[i] for i in range(QDIM)]
        for t, (i, j) in enumerate(TRIL_IJ):
            ys[i] = ys[i] + row(A, QDIM + t) * xs[j]
        return ys

    def lowerT_mv(A, xs):                # y = L^T x
        ys = [row(A, j) * xs[j] for j in range(QDIM)]
        for t, (i, j) in enumerate(TRIL_IJ):
            ys[j] = ys[j] + row(A, QDIM + t) * xs[i]
        return ys

    vr = [row(v, j) for j in range(QDIM)]
    p = lowerT_mv(Lp, vr)                # p = L^T v

    # Coriolis force via  w_k = dM_k v = dL_k (L^T v) + L (dL_k^T v)
    W = []                               # W[k][i] = (w_k)_i, each (1, B)
    for k in range(QDIM):
        Jk = Jlp[:, k * B:(k + 1) * B]                          # (PDIM, B)
        rk = lowerT_mv(Jk, vr)                                  # dL_k^T v
        gk = lower_mv(Jk, p)                                    # dL_k (L^T v)
        hk = lower_mv(Lp, rk)                                   # L (dL_k^T v)
        W.append([gk[i] + hk[i] for i in range(QDIM)])

    # Cv_i = sum_k v_k (w_k)_i - 0.5 * v . w_i ;  rhs = F - Cv - dV/dq
    rhs = []
    for i in range(QDIM):
        term1 = sum(vr[k] * W[k][i] for k in range(QDIM))
        term2 = sum(vr[j] * W[i][j] for j in range(QDIM))
        Gi = Gq[:, i * B:(i + 1) * B]
        rhs.append(row(F, i) - (term1 - 0.5 * term2) - Gi)

    # ---------------- solve (L L^T) x = rhs (unrolled fwd/back subst) ---------
    inv_d = 1.0 / Lp[0:QDIM]             # one packed reciprocal (QDIM, B)
    inv = [row(inv_d, i) for i in range(QDIM)]

    y = []
    for i in range(QDIM):                                       # L y = rhs
        acc = rhs[i]
        for t, (ii, jj) in enumerate(TRIL_IJ):
            if ii == i:
                acc = acc - row(Lp, QDIM + t) * y[jj]
        y.append(acc * inv[i])
    xq = [None] * QDIM
    for i in range(QDIM - 1, -1, -1):                           # L^T x = y
        acc = y[i]
        for t, (ii, jj) in enumerate(TRIL_IJ):
            if jj == i:
                acc = acc - row(Lp, QDIM + t) * xq[ii]
        xq[i] = acc * inv[i]

    o_ref[...] = jnp.concatenate(xq, axis=0)                    # (QDIM, B) lane-dense


# ==============================================================================
# wrapper: weight packing (done once, tile-independent) + pallas_call
# ==============================================================================
def pack_weights(mass_params, pot_params, force_params):
    w1m, b1m, w2m, b2m, w3m, b3m = mass_params
    w1p, b1p, w2p, b2p, w3p, b3p = pot_params
    w1f, b1f, w2f, b2f, w3f, b3f = force_params
    H = HID
    f32 = jnp.float32

    # layer-1 transposed weights: rows [mass | pot | force]; mass/pot only see q
    W1T = jnp.zeros((3 * H, XDIM), f32)
    W1T = W1T.at[0:H, 0:QDIM].set(w1m.T)
    W1T = W1T.at[H:2 * H, 0:QDIM].set(w1p.T)
    W1T = W1T.at[2 * H:, :].set(w1f.T)
    b1T = jnp.concatenate([b1m, b1p, b1f], axis=1).T            # (3H, 1)

    W2T = jnp.zeros((3 * H, 3 * H), f32)
    W2T = W2T.at[0:H, 0:H].set(w2m.T)
    W2T = W2T.at[H:2 * H, H:2 * H].set(w2p.T)
    W2T = W2T.at[2 * H:, 2 * H:].set(w2f.T)
    b2T = jnp.concatenate([b2m, b2p, b2f], axis=1).T            # (3H, 1)

    W3T = jnp.zeros((ODIM, 3 * H), f32)
    W3T = W3T.at[0:PDIM, 0:H].set(w3m.T)
    W3T = W3T.at[PDIM:PDIM + 1, H:2 * H].set(w3p.T)
    W3T = W3T.at[PDIM + 1:, 2 * H:].set(w3f.T)
    b3T = jnp.concatenate([b3m, b3p, b3f], axis=1).T            # (ODIM, 1)
    b3T = b3T.at[0:QDIM, :].add(L_BIAS)        # fold Cholesky diagonal bias into b3

    # compact forward-mode tangent seeds: d z1_(mass|pot) / d q_k
    SEED = jnp.concatenate([w1m, w1p], axis=1).T                # (2H, QDIM)

    return (W1T, b1T, W2T, b2T, W3T, b3T, SEED)


def learned_rigid_body_forward(q, v, u, mass_params, pot_params, force_params):
    B = q.shape[0]
    # batch tile along the lane axis: single step for small batch, else 128-multiples
    if B <= 1024:
        BB = B
    else:
        BB = None
        for cand in (1024, 512, 256, 128):
            if B % cand == 0:
                BB = cand
                break
        assert BB is not None, "large batch must be a multiple of 128"
    # TODO(synk): on v7x pick BB <= B // 2 (>= 2 grid steps) so both TensorCores get work.

    # batch-in-lanes: features along sublanes, batch along the 128-lane axis
    xT = jnp.concatenate([q, v, u], axis=1).T                   # (XDIM, B)
    packed = pack_weights(mass_params, pot_params, force_params)

    in_specs = [pl.BlockSpec((XDIM, BB), lambda i: (0, i))]
    for wgt in packed:
        in_specs.append(pl.BlockSpec(wgt.shape, lambda i: (0, 0)))   # resident weights

    flops = 2 * B * (XDIM * 3 * HID
                     + (1 + QDIM) * (3 * HID) * (3 * HID)
                     + (1 + QDIM) * (3 * HID) * ODIM)
    bytes_accessed = int(4 * (B * (XDIM + QDIM)
                              + sum(int(np.prod(w.shape)) for w in packed)))
    cost = pl.CostEstimate(flops=int(flops),
                           transcendentals=int(2 * B * 3 * HID),
                           bytes_accessed=bytes_accessed)

    outT = pl.pallas_call(
        rigid_body_kernel,
        out_shape=jax.ShapeDtypeStruct((QDIM, B), jnp.float32),
        grid=(B // BB,),
        in_specs=in_specs,
        out_specs=pl.BlockSpec((QDIM, BB), lambda i: (0, i)),
        compiler_params=pltpu.CompilerParams(
            dimension_semantics=("parallel",)),
        cost_estimate=cost,
    )(xT, *packed)
    return outT.T                                               # (B, QDIM)


# ==============================================================================
# deterministic parameter init + pure-JAX reference (autodiff) for checking
# ==============================================================================
def init_mlp(key, sizes):
    params = []
    for fin, fout in zip(sizes[:-1], sizes[1:]):
        key, kw, kb = jax.random.split(key, 3)
        W = jax.random.normal(kw, (fin, fout), jnp.float32) * (0.5 / np.sqrt(fin))
        b = jax.random.normal(kb, (1, fout), jnp.float32) * 0.1
        params += [W, b]
    return key, tuple(params)


def mlp_ref(x, p):
    W1, b1, W2, b2, W3, b3 = p
    h = jnp.tanh(x @ W1 + b1)
    h = jnp.tanh(h @ W2 + b2)
    return h @ W3 + b3


def mass_matrix_ref(qrow, mp):
    lp = mlp_ref(qrow[None, :], mp)[0]
    L = jnp.zeros((QDIM, QDIM), jnp.float32)
    L = L.at[jnp.arange(QDIM), jnp.arange(QDIM)].set(lp[:QDIM] + L_BIAS)
    ii = jnp.array([i for i, j in TRIL_IJ])
    jj = jnp.array([j for i, j in TRIL_IJ])
    L = L.at[ii, jj].set(lp[QDIM:])
    return L @ L.T


def forward_ref(q, v, u, mp, pp, fp):
    def single(qrow, vrow, urow):
        M = mass_matrix_ref(qrow, mp)
        dM = jax.jacfwd(lambda qq: mass_matrix_ref(qq, mp))(qrow)   # dM[i,j,k]=dM_ij/dq_k
        Cv = (jnp.einsum('ijk,j,k->i', dM, vrow, vrow)
              - 0.5 * jnp.einsum('jki,j,k->i', dM, vrow, vrow))
        G = jax.grad(lambda qq: mlp_ref(qq[None, :], pp)[0, 0])(qrow)
        F = mlp_ref(jnp.concatenate([qrow, vrow, urow])[None, :], fp)[0]
        return jnp.linalg.solve(M, F - Cv - G)
    return jax.vmap(single)(q, v, u)


if __name__ == "__main__":
    key = jax.random.PRNGKey(0)
    key, kq, kv, ku = jax.random.split(key, 4)
    q = jax.random.normal(kq, (BATCH, QDIM), jnp.float32)
    v = jax.random.normal(kv, (BATCH, QDIM), jnp.float32)
    u = jax.random.normal(ku, (BATCH, UDIM), jnp.float32)

    key, mass_params = init_mlp(key, [QDIM, HID, HID, PDIM])              # CholeskyMMNet
    key, pot_params = init_mlp(key, [QDIM, HID, HID, 1])                  # PotentialNet
    key, force_params = init_mlp(key, [2 * QDIM + UDIM, HID, HID, QDIM])  # GeneralizedForceNet

    qddot = learned_rigid_body_forward(q, v, u, mass_params, pot_params, force_params)
    qddot = jax.block_until_ready(qddot)

    qddot_ref = jax.block_until_ready(
        forward_ref(q, v, u, mass_params, pot_params, force_params))
    np.testing.assert_allclose(np.asarray(qddot), np.asarray(qddot_ref),
                               rtol=1e-3, atol=1e-3)
    print("KERNEL_OK")
</pallas_src>

<mosaic_0001>
module attributes {stable_mosaic.version = 11 : i64} {
  func.func @rigid_body_kernel(%arg0: i32, %arg1: memref<8x8xf32, #tpu.memory_space<vmem>>, %arg2: memref<96x8xf32, #tpu.memory_space<vmem>>, %arg3: memref<96x1xf32, #tpu.memory_space<vmem>>, %arg4: memref<96x96xf32, #tpu.memory_space<vmem>>, %arg5: memref<96x1xf32, #tpu.memory_space<vmem>>, %arg6: memref<10x96xf32, #tpu.memory_space<vmem>>, %arg7: memref<10x1xf32, #tpu.memory_space<vmem>>, %arg8: memref<64x3xf32, #tpu.memory_space<vmem>>, %arg9: memref<3x8xf32, #tpu.memory_space<vmem>>) attributes {dimension_semantics = [#tpu.dimension_semantics<parallel>], iteration_bounds = array<i64: 1>, scalar_prefetch = 0 : i64, scratch_operands = 0 : i64, tpu.core_type = #tpu.core_type<tc>, window_params = [{transform_indices = @transform_0, window_bounds = array<i64: 8, 8>}, {pipeline_mode = #tpu.pipeline_mode<synchronous>, transform_indices = @transform_1, window_bounds = array<i64: 96, 8>}, {pipeline_mode = #tpu.pipeline_mode<synchronous>, transform_indices = @transform_2, window_bounds = array<i64: 96, 1>}, {pipeline_mode = #tpu.pipeline_mode<synchronous>, transform_indices = @transform_3, window_bounds = array<i64: 96, 96>}, {pipeline_mode = #tpu.pipeline_mode<synchronous>, transform_indices = @transform_4, window_bounds = array<i64: 96, 1>}, {pipeline_mode = #tpu.pipeline_mode<synchronous>, transform_indices = @transform_5, window_bounds = array<i64: 10, 96>}, {pipeline_mode = #tpu.pipeline_mode<synchronous>, transform_indices = @transform_6, window_bounds = array<i64: 10, 1>}, {pipeline_mode = #tpu.pipeline_mode<synchronous>, transform_indices = @transform_7, window_bounds = array<i64: 64, 3>}, {transform_indices = @transform_8, window_bounds = array<i64: 3, 8>}]} {
    %c0 = arith.constant 0 : index
    %c0_0 = arith.constant 0 : index
    %0 = vector.load %arg1[%c0, %c0_0] : memref<8x8xf32, #tpu.memory_space<vmem>>, vector<8x8xf32>
    %c0_1 = arith.constant 0 : index
    %c0_2 = arith.constant 0 : index
    %1 = vector.load %arg2[%c0_1, %c0_2] : memref<96x8xf32, #tpu.memory_space<vmem>>, vector<96x8xf32>
    %cst = arith.constant dense<0.000000e+00> : vector<96x8xf32>
    %2 = tpu.matmul %1, %0, %cst {dimension_numbers = #tpu.dot_dimension_numbers<[1], [0], [0], [1], [0, 0, 1, 1], [], []>} : vector<96x8xf32>, vector<8x8xf32>, vector<96x8xf32> -> vector<96x8xf32>
    %c0_3 = arith.constant 0 : index
    %c0_4 = arith.constant 0 : index
    %3 = vector.load %arg3[%c0_3, %c0_4] : memref<96x1xf32, #tpu.memory_space<vmem>>, vector<96x1xf32>
    %4 = vector.broadcast %3 : vector<96x1xf32> to vector<96x8xf32>
    %5 = arith.addf %2, %4 : vector<96x8xf32>
    %6 = math.tanh %5 : vector<96x8xf32>
    %7 = vector.extract_strided_slice %6 {offsets = [0, 0], sizes = [64, 8], strides = [1, 1]} : vector<96x8xf32> to vector<64x8xf32>
    %8 = vector.extract_strided_slice %6 {offsets = [0, 0], sizes = [64, 8], strides = [1, 1]} : vector<96x8xf32> to vector<64x8xf32>
    %9 = arith.mulf %7, %8 : vector<64x8xf32>
    %cst_5 = arith.constant 1.000000e+00 : f32
    %10 = vector.broadcast %cst_5 : f32 to vector<64x8xf32>
    %11 = arith.subf %10, %9 : vector<64x8xf32>
    %c0_6 = arith.constant 0 : index
    %c0_7 = arith.constant 0 : index
    %12 = vector.load %arg8[%c0_6, %c0_7] : memref<64x3xf32, #tpu.memory_space<vmem>>, vector<64x3xf32>
    %13 = vector.extract_strided_slice %12 {offsets = [0, 0], sizes = [64, 1], strides = [1, 1]} : vector<64x3xf32> to vector<64x1xf32>
    %14 = vector.broadcast %13 : vector<64x1xf32> to vector<64x8xf32>
    %15 = arith.mulf %11, %14 : vector<64x8xf32>
    %16 = vector.extract_strided_slice %12 {offsets = [0, 1], sizes = [64, 1], strides = [1, 1]} : vector<64x3xf32> to vector<64x1xf32>
    %17 = vector.broadcast %16 : vector<64x1xf32> to vector<64x8xf32>
    %18 = arith.mulf %11, %17 : vector<64x8xf32>
    %19 = vector.extract_strided_slice %12 {offsets = [0, 2], sizes = [64, 1], strides = [1, 1]} : vector<64x3xf32> to vector<64x1xf32>
    %20 = vector.broadcast %19 : vector<64x1xf32> to vector<64x8xf32>
    %21 = arith.mulf %11, %20 : vector<64x8xf32>
    %22 = tpu.concatenate %15, %18, %21 in 1 : vector<64x8xf32>, vector<64x8xf32>, vector<64x8xf32> -> vector<64x24xf32>
    %cst_8 = arith.constant 0.000000e+00 : f32
    %23 = vector.broadcast %cst_8 : f32 to vector<32x24xf32>
    %24 = tpu.concatenate %22, %23 in 0 : vector<64x24xf32>, vector<32x24xf32> -> vector<96x24xf32>
    %25 = tpu.concatenate %6, %24 in 1 : vector<96x8xf32>, vector<96x24xf32> -> vector<96x32xf32>
    %c0_9 = arith.constant 0 : index
    %c0_10 = arith.constant 0 : index
    %26 = vector.load %arg4[%c0_9, %c0_10] : memref<96x96xf32, #tpu.memory_space<vmem>>, vector<96x96xf32>
    %cst_11 = arith.constant dense<0.000000e+00> : vector<96x32xf32>
    %27 = tpu.matmul %26, %25, %cst_11 {dimension_numbers = #tpu.dot_dimension_numbers<[1], [0], [0], [1], [0, 0, 1, 1], [], []>} : vector<96x96xf32>, vector<96x32xf32>, vector<96x32xf32> -> vector<96x32xf32>
    %28 = vector.extract_strided_slice %27 {offsets = [0, 0], sizes = [96, 8], strides = [1, 1]} : vector<96x32xf32> to vector<96x8xf32>
    %c0_12 = arith.constant 0 : index
    %c0_13 = arith.constant 0 : index
    %29 = vector.load %arg5[%c0_12, %c0_13] : memref<96x1xf32, #tpu.memory_space<vmem>>, vector<96x1xf32>
    %30 = vector.broadcast %29 : vector<96x1xf32> to vector<96x8xf32>
    %31 = arith.addf %28, %30 : vector<96x8xf32>
    %32 = math.tanh %31 : vector<96x8xf32>
    %33 = vector.extract_strided_slice %32 {offsets = [0, 0], sizes = [64, 8], strides = [1, 1]} : vector<96x8xf32> to vector<64x8xf32>
    %34 = vector.extract_strided_slice %32 {offsets = [0, 0], sizes = [64, 8], strides = [1, 1]} : vector<96x8xf32> to vector<64x8xf32>
    %35 = arith.mulf %33, %34 : vector<64x8xf32>
    %cst_14 = arith.constant 1.000000e+00 : f32
    %36 = vector.broadcast %cst_14 : f32 to vector<64x8xf32>
    %37 = arith.subf %36, %35 : vector<64x8xf32>
    %38 = vector.extract_strided_slice %27 {offsets = [0, 8], sizes = [64, 8], strides = [1, 1]} : vector<96x32xf32> to vector<64x8xf32>
    %39 = arith.mulf %37, %38 : vector<64x8xf32>
    %40 = vector.extract_strided_slice %27 {offsets = [0, 16], sizes = [64, 8], strides = [1, 1]} : vector<96x32xf32> to vector<64x8xf32>
    %41 = arith.mulf %37, %40 : vector<64x8xf32>
    %42 = vector.extract_strided_slice %27 {offsets = [0, 24], sizes = [64, 8], strides = [1, 1]} : vector<96x32xf32> to vector<64x8xf32>
    %43 = arith.mulf %37, %42 : vector<64x8xf32>
    %44 = tpu.concatenate %39, %41, %43 in 1 : vector<64x8xf32>, vector<64x8xf32>, vector<64x8xf32> -> vector<64x24xf32>
    %45 = tpu.concatenate %44, %23 in 0 : vector<64x24xf32>, vector<32x24xf32> -> vector<96x24xf32>
    %46 = tpu.concatenate %32, %45 in 1 : vector<96x8xf32>, vector<96x24xf32> -> vector<96x32xf32>
    %c0_15 = arith.constant 0 : index
    %c0_16 = arith.constant 0 : index
    %47 = vector.load %arg6[%c0_15, %c0_16] : memref<10x96xf32, #tpu.memory_space<vmem>>, vector<10x96xf32>
    %cst_17 = arith.constant dense<0.000000e+00> : vector<10x32xf32>
    %48 = tpu.matmul %47, %46, %cst_17 {dimension_numbers = #tpu.dot_dimension_numbers<[1], [0], [0], [1], [0, 0, 1, 1], [], []>} : vector<10x96xf32>, vector<96x32xf32>, vector<10x32xf32> -> vector<10x32xf32>
    %49 = vector.extract_strided_slice %48 {offsets = [0, 0], sizes = [10, 8], strides = [1, 1]} : vector<10x32xf32> to vector<10x8xf32>
    %c0_18 = arith.constant 0 : index
    %c0_19 = arith.constant 0 : index
    %50 = vector.load %arg7[%c0_18, %c0_19] : memref<10x1xf32, #tpu.memory_space<vmem>>, vector<10x1xf32>
    %51 = vector.broadcast %50 : vector<10x1xf32> to vector<10x8xf32>
    %52 = arith.addf %49, %51 : vector<10x8xf32>
    %53 = vector.extract_strided_slice %48 {offsets = [0, 8], sizes = [10, 24], strides = [1, 1]} : vector<10x32xf32> to vector<10x24xf32>
    %54 = vector.extract_strided_slice %52 {offsets = [0, 0], sizes = [6, 8], strides = [1, 1]} : vector<10x8xf32> to vector<6x8xf32>
    %55 = vector.extract_strided_slice %52 {offsets = [7, 0], sizes = [3, 8], strides = [1, 1]} : vector<10x8xf32> to vector<3x8xf32>
    %56 = vector.extract_strided_slice %53 {offsets = [0, 0], sizes = [6, 24], strides = [1, 1]} : vector<10x24xf32> to vector<6x24xf32>
    %57 = vector.extract_strided_slice %53 {offsets = [6, 0], sizes = [1, 24], strides = [1, 1]} : vector<10x24xf32> to vector<1x24xf32>
    %58 = vector.extract_strided_slice %0 {offsets = [3, 0], sizes = [3, 8], strides = [1, 1]} : vector<8x8xf32> to vector<3x8xf32>
    %59 = vector.extract_strided_slice %58 {offsets = [0, 0], sizes = [1, 8], strides = [1, 1]} : vector<3x8xf32> to vector<1x8xf32>
    %60 = vector.extract_strided_slice %58 {offsets = [1, 0], sizes = [1, 8], strides = [1, 1]} : vector<3x8xf32> to vector<1x8xf32>
    %61 = vector.extract_strided_slice %58 {offsets = [2, 0], sizes = [1, 8], strides = [1, 1]} : vector<3x8xf32> to vector<1x8xf32>
    %62 = vector.extract_strided_slice %54 {offsets = [0, 0], sizes = [1, 8], strides = [1, 1]} : vector<6x8xf32> to vector<1x8xf32>
    %63 = arith.mulf %62, %59 : vector<1x8xf32>
    %64 = vector.extract_strided_slice %54 {offsets = [1, 0], sizes = [1, 8], strides = [1, 1]} : vector<6x8xf32> to vector<1x8xf32>
    %65 = arith.mulf %64, %60 : vector<1x8xf32>
    %66 = vector.extract_strided_slice %54 {offsets = [2, 0], sizes = [1, 8], strides = [1, 1]} : vector<6x8xf32> to vector<1x8xf32>
    %67 = arith.mulf %66, %61 : vector<1x8xf32>
    %68 = vector.extract_strided_slice %54 {offsets = [3, 0], sizes = [1, 8], strides = [1, 1]} : vector<6x8xf32> to vector<1x8xf32>
    %69 = arith.mulf %68, %60 : vector<1x8xf32>
    %70 = arith.addf %63, %69 : vector<1x8xf32>
    %71 = vector.extract_strided_slice %54 {offsets = [4, 0], sizes = [1, 8], strides = [1, 1]} : vector<6x8xf32> to vector<1x8xf32>
    %72 = arith.mulf %71, %61 : vector<1x8xf32>
    %73 = arith.addf %70, %72 : vector<1x8xf32>
    %74 = vector.extract_strided_slice %54 {offsets = [5, 0], sizes = [1, 8], strides = [1, 1]} : vector<6x8xf32> to vector<1x8xf32>
    %75 = arith.mulf %74, %61 : vector<1x8xf32>
    %76 = arith.addf %65, %75 : vector<1x8xf32>
    %77 = vector.extract_strided_slice %56 {offsets = [0, 0], sizes = [6, 8], strides = [1, 1]} : vector<6x24xf32> to vector<6x8xf32>
    %78 = vector.extract_strided_slice %77 {offsets = [0, 0], sizes = [1, 8], strides = [1, 1]} : vector<6x8xf32> to vector<1x8xf32>
    %79 = arith.mulf %78, %59 : vector<1x8xf32>
    %80 = vector.extract_strided_slice %77 {offsets = [1, 0], sizes = [1, 8], strides = [1, 1]} : vector<6x8xf32> to vector<1x8xf32>
    %81 = arith.mulf %80, %60 : vector<1x8xf32>
    %82 = vector.extract_strided_slice %77 {offsets = [2, 0], sizes = [1, 8], strides = [1, 1]} : vector<6x8xf32> to vector<1x8xf32>
    %83 = arith.mulf %82, %61 : vector<1x8xf32>
    %84 = vector.extract_strided_slice %77 {offsets = [3, 0], sizes = [1, 8], strides = [1, 1]} : vector<6x8xf32> to vector<1x8xf32>
    %85 = arith.mulf %84, %60 : vector<1x8xf32>
    %86 = arith.addf %79, %85 : vector<1x8xf32>
    %87 = vector.extract_strided_slice %77 {offsets = [4, 0], sizes = [1, 8], strides = [1, 1]} : vector<6x8xf32> to vector<1x8xf32>
    %88 = arith.mulf %87, %61 : vector<1x8xf32>
    %89 = arith.addf %86, %88 : vector<1x8xf32>
    %90 = vector.extract_strided_slice %77 {offsets = [5, 0], sizes = [1, 8], strides = [1, 1]} : vector<6x8xf32> to vector<1x8xf32>
    %91 = arith.mulf %90, %61 : vector<1x8xf32>
    %92 = arith.addf %81, %91 : vector<1x8xf32>
    %93 = vector.extract_strided_slice %77 {offsets = [0, 0], sizes = [1, 8], strides = [1, 1]} : vector<6x8xf32> to vector<1x8xf32>
    %94 = arith.mulf %93, %73 : vector<1x8xf32>
    %95 = vector.extract_strided_slice %77 {offsets = [1, 0], sizes = [1, 8], strides = [1, 1]} : vector<6x8xf32> to vector<1x8xf32>
    %96 = arith.mulf %95, %76 : vector<1x8xf32>
    %97 = vector.extract_strided_slice %77 {offsets = [2, 0], sizes = [1, 8], strides = [1, 1]} : vector<6x8xf32> to vector<1x8xf32>
    %98 = arith.mulf %97, %67 : vector<1x8xf32>
    %99 = vector.extract_strided_slice %77 {offsets = [3, 0], sizes = [1, 8], strides = [1, 1]} : vector<6x8xf32> to vector<1x8xf32>
    %100 = arith.mulf %99, %73 : vector<1x8xf32>
    %101 = arith.addf %96, %100 : vector<1x8xf32>
    %102 = vector.extract_strided_slice %77 {offsets = [4, 0], sizes = [1, 8], strides = [1, 1]} : vector<6x8xf32> to vector<1x8xf32>
    %103 = arith.mulf %102, %73 : vector<1x8xf32>
    %104 = arith.addf %98, %103 : vector<1x8xf32>
    %105 = vector.extract_strided_slice %77 {offsets = [5, 0], sizes = [1, 8], strides = [1, 1]} : vector<6x8xf32> to vector<1x8xf32>
    %106 = arith.mulf %105, %76 : vector<1x8xf32>
    %107 = arith.addf %104, %106 : vector<1x8xf32>
    %108 = vector.extract_strided_slice %54 {offsets = [0, 0], sizes = [1, 8], strides = [1, 1]} : vector<6x8xf32> to vector<1x8xf32>
    %109 = arith.mulf %108, %89 : vector<1x8xf32>
    %110 = vector.extract_strided_slice %54 {offsets = [1, 0], sizes = [1, 8], strides = [1, 1]} : vector<6x8xf32> to vector<1x8xf32>
    %111 = arith.mulf %110, %92 : vector<1x8xf32>
    %112 = vector.extract_strided_slice %54 {offsets = [2, 0], sizes = [1, 8], strides = [1, 1]} : vector<6x8xf32> to vector<1x8xf32>
    %113 = arith.mulf %112, %83 : vector<1x8xf32>
    %114 = vector.extract_strided_slice %54 {offsets = [3, 0], sizes = [1, 8], strides = [1, 1]} : vector<6x8xf32> to vector<1x8xf32>
    %115 = arith.mulf %114, %89 : vector<1x8xf32>
    %116 = arith.addf %111, %115 : vector<1x8xf32>
    %117 = vector.extract_strided_slice %54 {offsets = [4, 0], sizes = [1, 8], strides = [1, 1]} : vector<6x8xf32> to vector<1x8xf32>
    %118 = arith.mulf %117, %89 : vector<1x8xf32>
    %119 = arith.addf %113, %118 : vector<1x8xf32>
    %120 = vector.extract_strided_slice %54 {offsets = [5, 0], sizes = [1, 8], strides = [1, 1]} : vector<6x8xf32> to vector<1x8xf32>
    %121 = arith.mulf %120, %92 : vector<1x8xf32>
    %122 = arith.addf %119, %121 : vector<1x8xf32>
    %123 = arith.addf %94, %109 : vector<1x8xf32>
    %124 = arith.addf %101, %116 : vector<1x8xf32>
    %125 = arith.addf %107, %122 : vector<1x8xf32>
    %126 = vector.extract_strided_slice %56 {offsets = [0, 8], sizes = [6, 8], strides = [1, 1]} : vector<6x24xf32> to vector<6x8xf32>
    %127 = vector.extract_strided_slice %126 {offsets = [0, 0], sizes = [1, 8], strides = [1, 1]} : vector<6x8xf32> to vector<1x8xf32>
    %128 = arith.mulf %127, %59 : vector<1x8xf32>
    %129 = vector.extract_strided_slice %126 {offsets = [1, 0], sizes = [1, 8], strides = [1, 1]} : vector<6x8xf32> to vector<1x8xf32>
    %130 = arith.mulf %129, %60 : vector<1x8xf32>
    %131 = vector.extract_strided_slice %126 {offsets = [2, 0], sizes = [1, 8], strides = [1, 1]} : vector<6x8xf32> to vector<1x8xf32>
    %132 = arith.mulf %131, %61 : vector<1x8xf32>
    %133 = vector.extract_strided_slice %126 {offsets = [3, 0], sizes = [1, 8], strides = [1, 1]} : vector<6x8xf32> to vector<1x8xf32>
    %134 = arith.mulf %133, %60 : vector<1x8xf32>
    %135 = arith.addf %128, %134 : vector<1x8xf32>
    %136 = vector.extract_strided_slice %126 {offsets = [4, 0], sizes = [1, 8], strides = [1, 1]} : vector<6x8xf32> to vector<1x8xf32>
    %137 = arith.mulf %136, %61 : vector<1x8xf32>
    %138 = arith.addf %135, %137 : vector<1x8xf32>
    %139 = vector.extract_strided_slice %126 {offsets = [5, 0], sizes = [1, 8], strides = [1, 1]} : vector<6x8xf32> to vector<1x8xf32>
    %140 = arith.mulf %139, %61 : vector<1x8xf32>
    %141 = arith.addf %130, %140 : vector<1x8xf32>
    %142 = vector.extract_strided_slice %126 {offsets = [0, 0], sizes = [1, 8], strides = [1, 1]} : vector<6x8xf32> to vector<1x8xf32>
    %143 = arith.mulf %142, %73 : vector<1x8xf32>
    %144 = vector.extract_strided_slice %126 {offsets = [1, 0], sizes = [1, 8], strides = [1, 1]} : vector<6x8xf32> to vector<1x8xf32>
    %145 = arith.mulf %144, %76 : vector<1x8xf32>
    %146 = vector.extract_strided_slice %126 {offsets = [2, 0], sizes = [1, 8], strides = [1, 1]} : vector<6x8xf32> to vector<1x8xf32>
    %147 = arith.mulf %146, %67 : vector<1x8xf32>
    %148 = vector.extract_strided_slice %126 {offsets = [3, 0], sizes = [1, 8], strides = [1, 1]} : vector<6x8xf32> to vector<1x8xf32>
    %149 = arith.mulf %148, %73 : vector<1x8xf32>
    %150 = arith.addf %145, %149 : vector<1x8xf32>
    %151 = vector.extract_strided_slice %126 {offsets = [4, 0], sizes = [1, 8], strides = [1, 1]} : vector<6x8xf32> to vector<1x8xf32>
    %152 = arith.mulf %151, %73 : vector<1x8xf32>
    %153 = arith.addf %147, %152 : vector<1x8xf32>
    %154 = vector.extract_strided_slice %126 {offsets = [5, 0], sizes = [1, 8], strides = [1, 1]} : vector<6x8xf32> to vector<1x8xf32>
    %155 = arith.mulf %154, %76 : vector<1x8xf32>
    %156 = arith.addf %153, %155 : vector<1x8xf32>
    %157 = vector.extract_strided_slice %54 {offsets = [0, 0], sizes = [1, 8], strides = [1, 1]} : vector<6x8xf32> to vector<1x8xf32>
    %158 = arith.mulf %157, %138 : vector<1x8xf32>
    %159 = vector.extract_strided_slice %54 {offsets = [1, 0], sizes = [1, 8], strides = [1, 1]} : vector<6x8xf32> to vector<1x8xf32>
    %160 = arith.mulf %159, %141 : vector<1x8xf32>
    %161 = vector.extract_strided_slice %54 {offsets = [2, 0], sizes = [1, 8], strides = [1, 1]} : vector<6x8xf32> to vector<1x8xf32>
    %162 = arith.mulf %161, %132 : vector<1x8xf32>
    %163 = vector.extract_strided_slice %54 {offsets = [3, 0], sizes = [1, 8], strides = [1, 1]} : vector<6x8xf32> to vector<1x8xf32>
    %164 = arith.mulf %163, %138 : vector<1x8xf32>
    %165 = arith.addf %160, %164 : vector<1x8xf32>
    %166 = vector.extract_strided_slice %54 {offsets = [4, 0], sizes = [1, 8], strides = [1, 1]} : vector<6x8xf32> to vector<1x8xf32>
    %167 = arith.mulf %166, %138 : vector<1x8xf32>
    %168 = arith.addf %162, %167 : vector<1x8xf32>
    %169 = vector.extract_strided_slice %54 {offsets = [5, 0], sizes = [1, 8], strides = [1, 1]} : vector<6x8xf32> to vector<1x8xf32>
    %170 = arith.mulf %169, %141 : vector<1x8xf32>
    %171 = arith.addf %168, %170 : vector<1x8xf32>
    %172 = arith.addf %143, %158 : vector<1x8xf32>
    %173 = arith.addf %150, %165 : vector<1x8xf32>
    %174 = arith.addf %156, %171 : vector<1x8xf32>
    %175 = vector.extract_strided_slice %56 {offsets = [0, 16], sizes = [6, 8], strides = [1, 1]} : vector<6x24xf32> to vector<6x8xf32>
    %176 = vector.extract_strided_slice %175 {offsets = [0, 0], sizes = [1, 8], strides = [1, 1]} : vector<6x8xf32> to vector<1x8xf32>
    %177 = arith.mulf %176, %59 : vector<1x8xf32>
    %178 = vector.extract_strided_slice %175 {offsets = [1, 0], sizes = [1, 8], strides = [1, 1]} : vector<6x8xf32> to vector<1x8xf32>
    %179 = arith.mulf %178, %60 : vector<1x8xf32>
    %180 = vector.extract_strided_slice %175 {offsets = [2, 0], sizes = [1, 8], strides = [1, 1]} : vector<6x8xf32> to vector<1x8xf32>
    %181 = arith.mulf %180, %61 : vector<1x8xf32>
    %182 = vector.extract_strided_slice %175 {offsets = [3, 0], sizes = [1, 8], strides = [1, 1]} : vector<6x8xf32> to vector<1x8xf32>
    %183 = arith.mulf %182, %60 : vector<1x8xf32>
    %184 = arith.addf %177, %183 : vector<1x8xf32>
    %185 = vector.extract_strided_slice %175 {offsets = [4, 0], sizes = [1, 8], strides = [1, 1]} : vector<6x8xf32> to vector<1x8xf32>
    %186 = arith.mulf %185, %61 : vector<1x8xf32>
    %187 = arith.addf %184, %186 : vector<1x8xf32>
    %188 = vector.extract_strided_slice %175 {offsets = [5, 0], sizes = [1, 8], strides = [1, 1]} : vector<6x8xf32> to vector<1x8xf32>
    %189 = arith.mulf %188, %61 : vector<1x8xf32>
    %190 = arith.addf %179, %189 : vector<1x8xf32>
    %191 = vector.extract_strided_slice %175 {offsets = [0, 0], sizes = [1, 8], strides = [1, 1]} : vector<6x8xf32> to vector<1x8xf32>
    %192 = arith.mulf %191, %73 : vector<1x8xf32>
    %193 = vector.extract_strided_slice %175 {offsets = [1, 0], sizes = [1, 8], strides = [1, 1]} : vector<6x8xf32> to vector<1x8xf32>
    %194 = arith.mulf %193, %76 : vector<1x8xf32>
    %195 = vector.extract_strided_slice %175 {offsets = [2, 0], sizes = [1, 8], strides = [1, 1]} : vector<6x8xf32> to vector<1x8xf32>
    %196 = arith.mulf %195, %67 : vector<1x8xf32>
    %197 = vector.extract_strided_slice %175 {offsets = [3, 0], sizes = [1, 8], strides = [1, 1]} : vector<6x8xf32> to vector<1x8xf32>
    %198 = arith.mulf %197, %73 : vector<1x8xf32>
    %199 = arith.addf %194, %198 : vector<1x8xf32>
    %200 = vector.extract_strided_slice %175 {offsets = [4, 0], sizes = [1, 8], strides = [1, 1]} : vector<6x8xf32> to vector<1x8xf32>
    %201 = arith.mulf %200, %73 : vector<1x8xf32>
    %202 = arith.addf %196, %201 : vector<1x8xf32>
    %203 = vector.extract_strided_slice %175 {offsets = [5, 0], sizes = [1, 8], strides = [1, 1]} : vector<6x8xf32> to vector<1x8xf32>
    %204 = arith.mulf %203, %76 : vector<1x8xf32>
    %205 = arith.addf %202, %204 : vector<1x8xf32>
    %206 = vector.extract_strided_slice %54 {offsets = [0, 0], sizes = [1, 8], strides = [1, 1]} : vector<6x8xf32> to vector<1x8xf32>
    %207 = arith.mulf %206, %187 : vector<1x8xf32>
    %208 = vector.extract_strided_slice %54 {offsets = [1, 0], sizes = [1, 8], strides = [1, 1]} : vector<6x8xf32> to vector<1x8xf32>
    %209 = arith.mulf %208, %190 : vector<1x8xf32>
    %210 = vector.extract_strided_slice %54 {offsets = [2, 0], sizes = [1, 8], strides = [1, 1]} : vector<6x8xf32> to vector<1x8xf32>
    %211 = arith.mulf %210, %181 : vector<1x8xf32>
    %212 = vector.extract_strided_slice %54 {offsets = [3, 0], sizes = [1, 8], strides = [1, 1]} : vector<6x8xf32> to vector<1x8xf32>
    %213 = arith.mulf %212, %187 : vector<1x8xf32>
    %214 = arith.addf %209, %213 : vector<1x8xf32>
    %215 = vector.extract_strided_slice %54 {offsets = [4, 0], sizes = [1, 8], strides = [1, 1]} : vector<6x8xf32> to vector<1x8xf32>
    %216 = arith.mulf %215, %187 : vector<1x8xf32>
    %217 = arith.addf %211, %216 : vector<1x8xf32>
    %218 = vector.extract_strided_slice %54 {offsets = [5, 0], sizes = [1, 8], strides = [1, 1]} : vector<6x8xf32> to vector<1x8xf32>
    %219 = arith.mulf %218, %190 : vector<1x8xf32>
    %220 = arith.addf %217, %219 : vector<1x8xf32>
    %221 = arith.addf %192, %207 : vector<1x8xf32>
    %222 = arith.addf %199, %214 : vector<1x8xf32>
    %223 = arith.addf %205, %220 : vector<1x8xf32>
    %224 = arith.mulf %59, %123 : vector<1x8xf32>
    %cst_20 = arith.constant 0.000000e+00 : f32
    %225 = vector.broadcast %cst_20 : f32 to vector<1x8xf32>
    %226 = arith.addf %225, %224 : vector<1x8xf32>
    %227 = arith.mulf %60, %172 : vector<1x8xf32>
    %228 = arith.addf %226, %227 : vector<1x8xf32>
    %229 = arith.mulf %61, %221 : vector<1x8xf32>
    %230 = arith.addf %228, %229 : vector<1x8xf32>
    %231 = arith.mulf %59, %123 : vector<1x8xf32>
    %cst_21 = arith.constant 0.000000e+00 : f32
    %232 = vector.broadcast %cst_21 : f32 to vector<1x8xf32>
    %233 = arith.addf %232, %231 : vector<1x8xf32>
    %234 = arith.mulf %60, %124 : vector<1x8xf32>
    %235 = arith.addf %233, %234 : vector<1x8xf32>
    %236 = arith.mulf %61, %125 : vector<1x8xf32>
    %237 = arith.addf %235, %236 : vector<1x8xf32>
    %238 = vector.extract_strided_slice %57 {offsets = [0, 0], sizes = [1, 8], strides = [1, 1]} : vector<1x24xf32> to vector<1x8xf32>
    %239 = vector.extract_strided_slice %55 {offsets = [0, 0], sizes = [1, 8], strides = [1, 1]} : vector<3x8xf32> to vector<1x8xf32>
    %cst_22 = arith.constant 5.000000e-01 : f32
    %240 = vector.broadcast %cst_22 : f32 to vector<1x8xf32>
    %241 = arith.mulf %240, %237 : vector<1x8xf32>
    %242 = arith.subf %230, %241 : vector<1x8xf32>
    %243 = arith.subf %239, %242 : vector<1x8xf32>
    %244 = arith.subf %243, %238 : vector<1x8xf32>
    %245 = arith.mulf %59, %124 : vector<1x8xf32>
    %cst_23 = arith.constant 0.000000e+00 : f32
    %246 = vector.broadcast %cst_23 : f32 to vector<1x8xf32>
    %247 = arith.addf %246, %245 : vector<1x8xf32>
    %248 = arith.mulf %60, %173 : vector<1x8xf32>
    %249 = arith.addf %247, %248 : vector<1x8xf32>
    %250 = arith.mulf %61, %222 : vector<1x8xf32>
    %251 = arith.addf %249, %250 : vector<1x8xf32>
    %252 = arith.mulf %59, %172 : vector<1x8xf32>
    %cst_24 = arith.constant 0.000000e+00 : f32
    %253 = vector.broadcast %cst_24 : f32 to vector<1x8xf32>
    %254 = arith.addf %253, %252 : vector<1x8xf32>
    %255 = arith.mulf %60, %173 : vector<1x8xf32>
    %256 = arith.addf %254, %255 : vector<1x8xf32>
    %257 = arith.mulf %61, %174 : vector<1x8xf32>
    %258 = arith.addf %256, %257 : vector<1x8xf32>
    %259 = vector.extract_strided_slice %57 {offsets = [0, 8], sizes = [1, 8], strides = [1, 1]} : vector<1x24xf32> to vector<1x8xf32>
    %260 = vector.extract_strided_slice %55 {offsets = [1, 0], sizes = [1, 8], strides = [1, 1]} : vector<3x8xf32> to vector<1x8xf32>
    %cst_25 = arith.constant 5.000000e-01 : f32
    %261 = vector.broadcast %cst_25 : f32 to vector<1x8xf32>
    %262 = arith.mulf %261, %258 : vector<1x8xf32>
    %263 = arith.subf %251, %262 : vector<1x8xf32>
    %264 = arith.subf %260, %263 : vector<1x8xf32>
    %265 = arith.subf %264, %259 : vector<1x8xf32>
    %266 = arith.mulf %59, %125 : vector<1x8xf32>
    %cst_26 = arith.constant 0.000000e+00 : f32
    %267 = vector.broadcast %cst_26 : f32 to vector<1x8xf32>
    %268 = arith.addf %267, %266 : vector<1x8xf32>
    %269 = arith.mulf %60, %174 : vector<1x8xf32>
    %270 = arith.addf %268, %269 : vector<1x8xf32>
    %271 = arith.mulf %61, %223 : vector<1x8xf32>
    %272 = arith.addf %270, %271 : vector<1x8xf32>
    %273 = arith.mulf %59, %221 : vector<1x8xf32>
    %cst_27 = arith.constant 0.000000e+00 : f32
    %274 = vector.broadcast %cst_27 : f32 to vector<1x8xf32>
    %275 = arith.addf %274, %273 : vector<1x8xf32>
    %276 = arith.mulf %60, %222 : vector<1x8xf32>
    %277 = arith.addf %275, %276 : vector<1x8xf32>
    %278 = arith.mulf %61, %223 : vector<1x8xf32>
    %279 = arith.addf %277, %278 : vector<1x8xf32>
    %280 = vector.extract_strided_slice %57 {offsets = [0, 16], sizes = [1, 8], strides = [1, 1]} : vector<1x24xf32> to vector<1x8xf32>
    %281 = vector.extract_strided_slice %55 {offsets = [2, 0], sizes = [1, 8], strides = [1, 1]} : vector<3x8xf32> to vector<1x8xf32>
    %cst_28 = arith.constant 5.000000e-01 : f32
    %282 = vector.broadcast %cst_28 : f32 to vector<1x8xf32>
    %283 = arith.mulf %282, %279 : vector<1x8xf32>
    %284 = arith.subf %272, %283 : vector<1x8xf32>
    %285 = arith.subf %281, %284 : vector<1x8xf32>
    %286 = arith.subf %285, %280 : vector<1x8xf32>
    %287 = vector.extract_strided_slice %54 {offsets = [0, 0], sizes = [3, 8], strides = [1, 1]} : vector<6x8xf32> to vector<3x8xf32>
    %cst_29 = arith.constant 1.000000e+00 : f32
    %288 = vector.broadcast %cst_29 : f32 to vector<3x8xf32>
    %289 = arith.divf %288, %287 : vector<3x8xf32>
    %290 = vector.extract_strided_slice %289 {offsets = [0, 0], sizes = [1, 8], strides = [1, 1]} : vector<3x8xf32> to vector<1x8xf32>
    %291 = vector.extract_strided_slice %289 {offsets = [1, 0], sizes = [1, 8], strides = [1, 1]} : vector<3x8xf32> to vector<1x8xf32>
    %292 = vector.extract_strided_slice %289 {offsets = [2, 0], sizes = [1, 8], strides = [1, 1]} : vector<3x8xf32> to vector<1x8xf32>
    %293 = arith.mulf %244, %290 : vector<1x8xf32>
    %294 = vector.extract_strided_slice %54 {offsets = [3, 0], sizes = [1, 8], strides = [1, 1]} : vector<6x8xf32> to vector<1x8xf32>
    %295 = arith.mulf %294, %293 : vector<1x8xf32>
    %296 = arith.subf %265, %295 : vector<1x8xf32>
    %297 = arith.mulf %296, %291 : vector<1x8xf32>
    %298 = vector.extract_strided_slice %54 {offsets = [4, 0], sizes = [1, 8], strides = [1, 1]} : vector<6x8xf32> to vector<1x8xf32>
    %299 = arith.mulf %298, %293 : vector<1x8xf32>
    %300 = arith.subf %286, %299 : vector<1x8xf32>
    %301 = vector.extract_strided_slice %54 {offsets = [5, 0], sizes = [1, 8], strides = [1, 1]} : vector<6x8xf32> to vector<1x8xf32>
    %302 = arith.mulf %301, %297 : vector<1x8xf32>
    %303 = arith.subf %300, %302 : vector<1x8xf32>
    %304 = arith.mulf %303, %292 : vector<1x8xf32>
    %305 = arith.mulf %304, %292 : vector<1x8xf32>
    %306 = vector.extract_strided_slice %54 {offsets = [5, 0], sizes = [1, 8], strides = [1, 1]} : vector<6x8xf32> to vector<1x8xf32>
    %307 = arith.mulf %306, %305 : vector<1x8xf32>
    %308 = arith.subf %297, %307 : vector<1x8xf32>
    %309 = arith.mulf %308, %291 : vector<1x8xf32>
    %310 = vector.extract_strided_slice %54 {offsets = [3, 0], sizes = [1, 8], strides = [1, 1]} : vector<6x8xf32> to vector<1x8xf32>
    %311 = arith.mulf %310, %309 : vector<1x8xf32>
    %312 = arith.subf %293, %311 : vector<1x8xf32>
    %313 = vector.extract_strided_slice %54 {offsets = [4, 0], sizes = [1, 8], strides = [1, 1]} : vector<6x8xf32> to vector<1x8xf32>
    %314 = arith.mulf %313, %305 : vector<1x8xf32>
    %315 = arith.subf %312, %314 : vector<1x8xf32>
    %316 = arith.mulf %315, %290 : vector<1x8xf32>
    %317 = tpu.concatenate %316, %309, %305 in 0 : vector<1x8xf32>, vector<1x8xf32>, vector<1x8xf32> -> vector<3x8xf32>
    %c0_30 = arith.constant 0 : index
    %c0_31 = arith.constant 0 : index
    %318 = vector.load %arg9[%c0_30, %c0_31] : memref<3x8xf32, #tpu.memory_space<vmem>>, vector<3x8xf32>
    tpu.vector_store %arg9[%c0_30, %c0_31], %317 {strides = array<i32>} : memref<3x8xf32, #tpu.memory_space<vmem>>, vector<3x8xf32>,
    return
  }
  func.func @transform_0(%arg0: i32) -> (i32, i32) {
    %c0_i32 = arith.constant 0 : i32
    %c0_i32_0 = arith.constant 0 : i32
    return %c0_i32, %arg0 : i32, i32
  }
  func.func @transform_1(%arg0: i32) -> (i32, i32) {
    %c0_i32 = arith.constant 0 : i32
    %c0_i32_0 = arith.constant 0 : i32
    %c0_i32_1 = arith.constant 0 : i32
    return %c0_i32, %c0_i32_0 : i32, i32
  }
  func.func @transform_2(%arg0: i32) -> (i32, i32) {
    %c0_i32 = arith.constant 0 : i32
    %c0_i32_0 = arith.constant 0 : i32
    %c0_i32_1 = arith.constant 0 : i32
    return %c0_i32, %c0_i32_0 : i32, i32
  }
  func.func @transform_3(%arg0: i32) -> (i32, i32) {
    %c0_i32 = arith.constant 0 : i32
    %c0_i32_0 = arith.constant 0 : i32
    %c0_i32_1 = arith.constant 0 : i32
    return %c0_i32, %c0_i32_0 : i32, i32
  }
  func.func @transform_4(%arg0: i32) -> (i32, i32) {
    %c0_i32 = arith.constant 0 : i32
    %c0_i32_0 = arith.constant 0 : i32
    %c0_i32_1 = arith.constant 0 : i32
    return %c0_i32, %c0_i32_0 : i32, i32
  }
  func.func @transform_5(%arg0: i32) -> (i32, i32) {
    %c0_i32 = arith.constant 0 : i32
    %c0_i32_0 = arith.constant 0 : i32
    %c0_i32_1 = arith.constant 0 : i32
    return %c0_i32, %c0_i32_0 : i32, i32
  }
  func.func @transform_6(%arg0: i32) -> (i32, i32) {
    %c0_i32 = arith.constant 0 : i32
    %c0_i32_0 = arith.constant 0 : i32
    %c0_i32_1 = arith.constant 0 : i32
    return %c0_i32, %c0_i32_0 : i32, i32
  }
  func.func @transform_7(%arg0: i32) -> (i32, i32) {
    %c0_i32 = arith.constant 0 : i32
    %c0_i32_0 = arith.constant 0 : i32
    %c0_i32_1 = arith.constant 0 : i32
    return %c0_i32, %c0_i32_0 : i32, i32
  }
  func.func @transform_8(%arg0: i32) -> (i32, i32) {
    %c0_i32 = arith.constant 0 : i32
    %c0_i32_0 = arith.constant 0 : i32
    return %c0_i32, %arg0 : i32, i32
  }
}

</mosaic_0001>

<llo_original>
// kernel: tpu_custom_call.1
$region0: #{tpu_custom_call.1}
  #allocation0 [shape = 'u32[]', space=smem, size = 0x4, offset = 0x4, fixed_abs, tag = 'smem constant byte address 0x4 - core index']
  #allocation1 [shape = 'u32[144,128]{1,0:T(1,128)}', space=vmem, size = 0x12000, scoped, tag = 'internal scratch']
  %s0 = inlined_call_operand.vmem [shape: f32[8,8], index: 0, kind: input, shape index: {}]
  %s1 = inlined_call_operand.vmem [shape: f32[96,8], index: 1, kind: input, shape index: {}]
  %s2 = inlined_call_operand.vmem [shape: f32[96,1], index: 2, kind: input, shape index: {}]
  %s3 = inlined_call_operand.vmem [shape: f32[96,96], index: 3, kind: input, shape index: {}]
  %s4 = inlined_call_operand.vmem [shape: f32[96,1], index: 4, kind: input, shape index: {}]
  %s5 = inlined_call_operand.vmem [shape: f32[10,96], index: 5, kind: input, shape index: {}]
  %s6 = inlined_call_operand.vmem [shape: f32[10,1], index: 6, kind: input, shape index: {}]
  %s7 = inlined_call_operand.vmem [shape: f32[64,3], index: 7, kind: input, shape index: {}]
  %s8 = inlined_call_operand.hbm [shape: f32[3,8], index: 8, kind: output, shape index: {}]
  %s9 = sld [smem:[#allocation0]]
  $region42: #{tpu_custom_call.1} parent=0
    _
  %s11 = ssub.s32 1, %s9
  %s12 = scalar_select 0, %s11, %s9
  $region1: #{tpu_custom_call.1} parent=0
    #allocation2 [shape = 'u8[2048]{0}', space=vmem, size = 0x800, scoped, tag = 'output window, operand 0, single buffered']
    #allocation3 [shape = 's32[1]{0}', space=sflag, size = 0x4, scoped, tag = 'scoped memory for tpu_custom_call.1']
    %13 = vsyncpa [#allocation3], 0
    // Predicated region
    $region2: #{tpu_custom_call.1} parent=1 // pred_check
      _
    $region3: #{tpu_custom_call.1} parent=1 // pred_check_branch
      %15 = sbr.rel (0) target = $region5
    $region4: #{tpu_custom_call.1} parent=1 // pred_region
      _
    $region5: #{tpu_custom_call.1} parent=1 // pred_fallthru
      _
    // Predicated region
    $region6: #{tpu_custom_call.1} parent=1 // pred_check
      _
    $region7: #{tpu_custom_call.1} parent=1 // pred_check_branch
      %17 = sbr.rel (0) target = $region9
    $region8: #{tpu_custom_call.1} parent=1 // pred_region
      _
    $region9: #{tpu_custom_call.1} parent=1 // pred_fallthru
      _
    // Predicated region
    $region10: #{tpu_custom_call.1} parent=1 // pred_check
      _
    $region11: #{tpu_custom_call.1} parent=1 // pred_check_branch
      %19 = sbr.rel (0) target = $region13
    $region12: #{tpu_custom_call.1} parent=1 // pred_region
      _
    $region13: #{tpu_custom_call.1} parent=1 // pred_fallthru
      _
    // Predicated region
    $region14: #{tpu_custom_call.1} parent=1 // pred_check
      _
    $region15: #{tpu_custom_call.1} parent=1 // pred_check_branch
      %21 = sbr.rel (0) target = $region17
    $region16: #{tpu_custom_call.1} parent=1 // pred_region
      _
    $region17: #{tpu_custom_call.1} parent=1 // pred_fallthru
      _
    // Predicated region
    $region18: #{tpu_custom_call.1} parent=1 // pred_check
      _
    $region19: #{tpu_custom_call.1} parent=1 // pred_check_branch
      %23 = sbr.rel (0) target = $region21
    $region20: #{tpu_custom_call.1} parent=1 // pred_region
      _
    $region21: #{tpu_custom_call.1} parent=1 // pred_fallthru
      _
    // Predicated region
    $region22: #{tpu_custom_call.1} parent=1 // pred_check
      _
    $region23: #{tpu_custom_call.1} parent=1 // pred_check_branch
      %25 = sbr.rel (0) target = $region25
    $region24: #{tpu_custom_call.1} parent=1 // pred_region
      _
    $region25: #{tpu_custom_call.1} parent=1 // pred_fallthru
      _
    // Predicated region
    $region26: #{tpu_custom_call.1} parent=1 // pred_check
      _
    $region27: #{tpu_custom_call.1} parent=1 // pred_check_branch
      %27 = sbr.rel (0) target = $region29
    $region28: #{tpu_custom_call.1} parent=1 // pred_region
      _
    $region29: #{tpu_custom_call.1} parent=1 // pred_fallthru
      _
    // Predicated region
    $region30: #{tpu_custom_call.1} parent=1 // pred_check
      _
    $region31: #{tpu_custom_call.1} parent=1 // pred_check_branch
      %29 = sbr.rel (0) target = $region33
    $region32: #{tpu_custom_call.1} parent=1 // pred_region
      _
    $region33: #{tpu_custom_call.1} parent=1 // pred_fallthru
      _
    %v30 = vld [vmem:[%s0] sm:$0xff]
    %v31 = vld [vmem:[%s1] sm:$0xff]
    %v32 = vld [vmem:[%s1 + $0x8] sm:$0xff]
    %v33 = vld [vmem:[%s1 + $0x10] sm:$0xff]
    %v34 = vld [vmem:[%s1 + $0x18] sm:$0xff]
    %v35 = vld [vmem:[%s1 + $0x20] sm:$0xff]
    %v36 = vld [vmem:[%s1 + $0x28] sm:$0xff]
    %v37 = vld [vmem:[%s1 + $0x30] sm:$0xff]
    %v38 = vld [vmem:[%s1 + $0x38] sm:$0xff]
    %v39 = vld [vmem:[%s1 + $0x40] sm:$0xff]
    %v40 = vld [vmem:[%s1 + $0x48] sm:$0xff]
    %v41 = vld [vmem:[%s1 + $0x50] sm:$0xff]
    %v42 = vld [vmem:[%s1 + $0x58] sm:$0xff]
    %v43 = vld [vmem:[%s2] sm:$0xff]
    %v44 = vld [vmem:[%s2 + $0x8] sm:$0xff]
    %v45 = vld [vmem:[%s2 + $0x10] sm:$0xff]
    %v46 = vld [vmem:[%s2 + $0x18] sm:$0xff]
    %v47 = vld [vmem:[%s2 + $0x20] sm:$0xff]
    %v48 = vld [vmem:[%s2 + $0x28] sm:$0xff]
    %v49 = vld [vmem:[%s2 + $0x30] sm:$0xff]
    %v50 = vld [vmem:[%s2 + $0x38] sm:$0xff]
    %v51 = vld [vmem:[%s2 + $0x40] sm:$0xff]
    %v52 = vld [vmem:[%s2 + $0x48] sm:$0xff]
    %v53 = vld [vmem:[%s2 + $0x50] sm:$0xff]
    %v54 = vld [vmem:[%s2 + $0x58] sm:$0xff]
    %56 = vset.pattern.permute.xlu0 0
    %57 = vperm.xlu0 %56, %v43
    %v58 = vpop.permute.xlu0 %57
    %61 = vset.pattern.permute.xlu0 0
    %62 = vperm.xlu0 %61, %v44
    %v63 = vpop.permute.xlu0 %62
    %66 = vset.pattern.permute.xlu0 0
    %67 = vperm.xlu0 %66, %v45
    %v68 = vpop.permute.xlu0 %67
    %71 = vset.pattern.permute.xlu0 0
    %72 = vperm.xlu0 %71, %v46
    %v73 = vpop.permute.xlu0 %72
    %76 = vset.pattern.permute.xlu0 0
    %77 = vperm.xlu0 %76, %v47
    %v78 = vpop.permute.xlu0 %77
    %81 = vset.pattern.permute.xlu0 0
    %82 = vperm.xlu0 %81, %v48
    %v83 = vpop.permute.xlu0 %82
    %86 = vset.pattern.permute.xlu0 0
    %87 = vperm.xlu0 %86, %v49
    %v88 = vpop.permute.xlu0 %87
    %91 = vset.pattern.permute.xlu0 0
    %92 = vperm.xlu0 %91, %v50
    %v93 = vpop.permute.xlu0 %92
    %96 = vset.pattern.permute.xlu0 0
    %97 = vperm.xlu0 %96, %v51
    %v98 = vpop.permute.xlu0 %97
    %101 = vset.pattern.permute.xlu0 0
    %102 = vperm.xlu0 %101, %v52
    %v103 = vpop.permute.xlu0 %102
    %106 = vset.pattern.permute.xlu0 0
    %107 = vperm.xlu0 %106, %v53
    %v108 = vpop.permute.xlu0 %107
    %111 = vset.pattern.permute.xlu0 0
    %112 = vperm.xlu0 %111, %v54
    %v113 = vpop.permute.xlu0 %112
    %vm115 = vcmask 64512
    %v117 = vsel %vm115, %v31, 0
    %v120 = vsel %vm115, %v32, 0
    %v123 = vsel %vm115, %v33, 0
    %v126 = vsel %vm115, %v34, 0
    %v129 = vsel %vm115, %v35, 0
    %v132 = vsel %vm115, %v36, 0
    %v135 = vsel %vm115, %v37, 0
    %v138 = vsel %vm115, %v38, 0
    %v141 = vsel %vm115, %v39, 0
    %v144 = vsel %vm115, %v40, 0
    %v147 = vsel %vm115, %v41, 0
    %v150 = vsel %vm115, %v42, 0
    %152 = vmatprep.subr.mxu0 0.0
    %153 = vmatpush1.msra.mxu0 %v30
    %154 = vmatprep.subr.mxu0 0.0
    %155 = vmatpush1.msra.mxu0 0.0
    %156 = vmatprep.subr.mxu0 0.0
    %157 = vmatpush1.msra.mxu0 0.0
    %158 = vmatprep.subr.mxu0 0.0
    %159 = vmatpush1.msra.mxu0 0.0
    %160 = vmatprep.subr.mxu0 0.0
    %161 = vmatpush1.msra.mxu0 0.0
    %162 = vmatprep.subr.mxu0 0.0
    %163 = vmatpush1.msra.mxu0 0.0
    %164 = vmatprep.subr.mxu0 0.0
    %165 = vmatpush1.msra.mxu0 0.0
    %166 = vmatprep.subr.mxu0 0.0
    %167 = vmatpush1.msra.mxu0 0.0
    %168 = vmatprep.subr.mxu0 0.0
    %169 = vmatpush1.msra.mxu0 0.0
    %170 = vmatprep.subr.mxu0 0.0
    %171 = vmatpush1.msra.mxu0 0.0
    %172 = vmatprep.subr.mxu0 0.0
    %173 = vmatpush1.msra.mxu0 0.0
    %174 = vmatprep.subr.mxu0 0.0
    %175 = vmatpush1.msra.mxu0 0.0
    %176 = vmatprep.subr.mxu0 0.0
    %177 = vmatpush1.msra.mxu0 0.0
    %178 = vmatprep.subr.mxu0 0.0
    %179 = vmatpush1.msra.mxu0 0.0
    %180 = vmatprep.subr.mxu0 0.0
    %181 = vmatpush1.msra.mxu0 0.0
    %182 = vmatprep.subr.mxu0 0.0
    %183 = vmatpush1.msra.mxu0 0.0
    %184 = vmatprep.subr.mxu0 0.0
    %185 = vmatpush1.msra.mxu0 0.0
    %186 = vmatprep.subr.mxu0 0.0
    %187 = vmatpush1.msra.mxu0 0.0
    %188 = vmatprep.subr.mxu0 0.0
    %189 = vmatpush1.msra.mxu0 0.0
    %190 = vmatprep.subr.mxu0 0.0
    %191 = vmatpush1.msra.mxu0 0.0
    %192 = vmatprep.subr.mxu0 0.0
    %193 = vmatpush1.msra.mxu0 0.0
    %194 = vmatprep.subr.mxu0 0.0
    %195 = vmatpush1.msra.mxu0 0.0
    %196 = vmatprep.subr.mxu0 0.0
    %197 = vmatpush1.msra.mxu0 0.0
    %198 = vmatprep.subr.mxu0 0.0
    %199 = vmatpush1.msra.mxu0 0.0
    %200 = vmatprep.subr.mxu0 0.0
    %201 = vmatpush1.msra.mxu0 0.0
    %202 = vmatprep.subr.mxu0 0.0
    %203 = vmatpush1.msra.mxu0 0.0
    %204 = vmatprep.subr.mxu0 0.0
    %205 = vmatpush1.msra.mxu0 0.0
    %206 = vmatprep.subr.mxu0 0.0
    %207 = vmatpush1.msra.mxu0 0.0
    %208 = vmatprep.subr.mxu0 0.0
    %209 = vmatpush1.msra.mxu0 0.0
    %210 = vmatprep.subr.mxu0 0.0
    %211 = vmatpush1.msra.mxu0 0.0
    %212 = vmatprep.subr.mxu0 0.0
    %213 = vmatpush1.msra.mxu0 0.0
    %214 = vmatprep.subr.mxu0 0.0
    %215 = vmatpush1.msra.mxu0 0.0
    %216 = vmatprep.mubr.f32.mxu0 0.0
    %217 = vmatmul.mubr.f32.gmra.mrb[0].mxu0 %v117
    %v218 = vpop.f32.mrb[0].mxu0
    %v219 = vadd.f32 %v58, %v218
    %v220 = vpop.f32.mrb[0].mxu0
    %221 = vmatprep.mubr.f32.mxu0 0.0
    %222 = vmatmul.mubr.f32.gmra.mrb[0].mxu0 %v120
    %v223 = vpop.f32.mrb[0].mxu0
    %v224 = vadd.f32 %v63, %v223
    %v225 = vpop.f32.mrb[0].mxu0
    %226 = vmatprep.mubr.f32.mxu0 0.0
    %227 = vmatmul.mubr.f32.gmra.mrb[0].mxu0 %v123
    %v228 = vpop.f32.mrb[0].mxu0
    %v229 = vadd.f32 %v68, %v228
    %v230 = vpop.f32.mrb[0].mxu0
    %231 = vmatprep.mubr.f32.mxu0 0.0
    %232 = vmatmul.mubr.f32.gmra.mrb[0].mxu0 %v126
    %v233 = vpop.f32.mrb[0].mxu0
    %v234 = vadd.f32 %v73, %v233
    %v235 = vpop.f32.mrb[0].mxu0
    %236 = vmatprep.mubr.f32.mxu0 0.0
    %237 = vmatmul.mubr.f32.gmra.mrb[0].mxu0 %v129
    %v238 = vpop.f32.mrb[0].mxu0
    %v239 = vadd.f32 %v78, %v238
    %v240 = vpop.f32.mrb[0].mxu0
    %241 = vmatprep.mubr.f32.mxu0 0.0
    %242 = vmatmul.mubr.f32.gmra.mrb[0].mxu0 %v132
    %v243 = vpop.f32.mrb[0].mxu0
    %v244 = vadd.f32 %v83, %v243
    %v245 = vpop.f32.mrb[0].mxu0
    %246 = vmatprep.mubr.f32.mxu0 0.0
    %247 = vmatmul.mubr.f32.gmra.mrb[0].mxu0 %v135
    %v248 = vpop.f32.mrb[0].mxu0
    %v249 = vadd.f32 %v88, %v248
    %v250 = vpop.f32.mrb[0].mxu0
    %251 = vmatprep.mubr.f32.mxu0 0.0
    %252 = vmatmul.mubr.f32.gmra.mrb[0].mxu0 %v138
    %v253 = vpop.f32.mrb[0].mxu0
    %v254 = vadd.f32 %v93, %v253
    %v255 = vpop.f32.mrb[0].mxu0
    %256 = vmatprep.mubr.f32.mxu0 0.0
    %257 = vmatmul.mubr.f32.gmra.mrb[0].mxu0 %v141
    %v258 = vpop.f32.mrb[0].mxu0
    %v259 = vadd.f32 %v98, %v258
    %v260 = vpop.f32.mrb[0].mxu0
    %261 = vmatprep.mubr.f32.mxu0 0.0
    %262 = vmatmul.mubr.f32.gmra.mrb[0].mxu0 %v144
    %v263 = vpop.f32.mrb[0].mxu0
    %v264 = vadd.f32 %v103, %v263
    %v265 = vpop.f32.mrb[0].mxu0
    %266 = vmatprep.mubr.f32.mxu0 0.0
    %267 = vmatmul.mubr.f32.gmra.mrb[0].mxu0 %v147
    %v268 = vpop.f32.mrb[0].mxu0
    %v269 = vadd.f32 %v108, %v268
    %v270 = vpop.f32.mrb[0].mxu0
    %271 = vmatprep.mubr.f32.mxu0 0.0
    %272 = vmatmul.mubr.f32.gmra.mrb[0].mxu0 %v150
    %v273 = vpop.f32.mrb[0].mxu0
    %v274 = vadd.f32 %v113, %v273
    %v275 = vpop.f32.mrb[0].mxu0
    %276 = vdwg.mxu0
    %v277 = vtanh.pop %v219
    %v278 = vtanh.pop %v224
    %v279 = vtanh.pop %v229
    %v280 = vtanh.pop %v234
    %v281 = vtanh.pop %v239
    %v282 = vtanh.pop %v244
    %v283 = vtanh.pop %v249
    %v284 = vtanh.pop %v254
    %v285 = vtanh.pop %v259
    %v286 = vtanh.pop %v264
    %v287 = vtanh.pop %v269
    %v288 = vtanh.pop %v274
    %v289 = vmul.f32 %v277, %v277
    %v290 = vmul.f32 %v278, %v278
    %v291 = vmul.f32 %v279, %v279
    %v292 = vmul.f32 %v280, %v280
    %v293 = vmul.f32 %v281, %v281
    %v294 = vmul.f32 %v282, %v282
    %v295 = vmul.f32 %v283, %v283
    %v296 = vmul.f32 %v284, %v284
    %v297 = vsub.f32 1.0, %v289
    %v298 = vsub.f32 1.0, %v290
    %v299 = vsub.f32 1.0, %v291
    %v300 = vsub.f32 1.0, %v292
    %v301 = vsub.f32 1.0, %v293
    %v302 = vsub.f32 1.0, %v294
    %v303 = vsub.f32 1.0, %v295
    %v304 = vsub.f32 1.0, %v296
    %v305 = vld [vmem:[%s7] sm:$0xff]
    %v306 = vld [vmem:[%s7 + $0x8] sm:$0xff]
    %v307 = vld [vmem:[%s7 + $0x10] sm:$0xff]
    %v308 = vld [vmem:[%s7 + $0x18] sm:$0xff]
    %v309 = vld [vmem:[%s7 + $0x20] sm:$0xff]
    %v310 = vld [vmem:[%s7 + $0x28] sm:$0xff]
    %v311 = vld [vmem:[%s7 + $0x30] sm:$0xff]
    %v312 = vld [vmem:[%s7 + $0x38] sm:$0xff]
    %314 = vset.pattern.permute.xlu0 0
    %315 = vperm.xlu0 %314, %v305
    %v316 = vpop.permute.xlu0 %315
    %319 = vset.pattern.permute.xlu0 0
    %320 = vperm.xlu0 %319, %v306
    %v321 = vpop.permute.xlu0 %320
    %324 = vset.pattern.permute.xlu0 0
    %325 = vperm.xlu0 %324, %v307
    %v326 = vpop.permute.xlu0 %325
    %329 = vset.pattern.permute.xlu0 0
    %330 = vperm.xlu0 %329, %v308
    %v331 = vpop.permute.xlu0 %330
    %334 = vset.pattern.permute.xlu0 0
    %335 = vperm.xlu0 %334, %v309
    %v336 = vpop.permute.xlu0 %335
    %339 = vset.pattern.permute.xlu0 0
    %340 = vperm.xlu0 %339, %v310
    %v341 = vpop.permute.xlu0 %340
    %344 = vset.pattern.permute.xlu0 0
    %345 = vperm.xlu0 %344, %v311
    %v346 = vpop.permute.xlu0 %345
    %349 = vset.pattern.permute.xlu0 0
    %350 = vperm.xlu0 %349, %v312
    %v351 = vpop.permute.xlu0 %350
    %v353 = vmul.f32 %v297, %v316
    %v354 = vmul.f32 %v298, %v321
    %v355 = vmul.f32 %v299, %v326
    %v356 = vmul.f32 %v300, %v331
    %v357 = vmul.f32 %v301, %v336
    %v358 = vmul.f32 %v302, %v341
    %v359 = vmul.f32 %v303, %v346
    %v360 = vmul.f32 %v304, %v351
    %361 = vset.pattern.permute.xlu0 1
    %362 = vperm.xlu0 %361, %v305
    %v363 = vpop.permute.xlu0 %362
    %365 = vset.pattern.permute.xlu0 1
    %366 = vperm.xlu0 %365, %v306
    %v367 = vpop.permute.xlu0 %366
    %369 = vset.pattern.permute.xlu0 1
    %370 = vperm.xlu0 %369, %v307
    %v371 = vpop.permute.xlu0 %370
    %373 = vset.pattern.permute.xlu0 1
    %374 = vperm.xlu0 %373, %v308
    %v375 = vpop.permute.xlu0 %374
    %377 = vset.pattern.permute.xlu0 1
    %378 = vperm.xlu0 %377, %v309
    %v379 = vpop.permute.xlu0 %378
    %381 = vset.pattern.permute.xlu0 1
    %382 = vperm.xlu0 %381, %v310
    %v383 = vpop.permute.xlu0 %382
    %385 = vset.pattern.permute.xlu0 1
    %386 = vperm.xlu0 %385, %v311
    %v387 = vpop.permute.xlu0 %386
    %389 = vset.pattern.permute.xlu0 1
    %390 = vperm.xlu0 %389, %v312
    %v391 = vpop.permute.xlu0 %390
    %v393 = vmul.f32 %v297, %v363
    %v394 = vmul.f32 %v298, %v367
    %v395 = vmul.f32 %v299, %v371
    %v396 = vmul.f32 %v300, %v375
    %v397 = vmul.f32 %v301, %v379
    %v398 = vmul.f32 %v302, %v383
    %v399 = vmul.f32 %v303, %v387
    %v400 = vmul.f32 %v304, %v391
    %401 = vset.pattern.permute.xlu0 2
    %402 = vperm.xlu0 %401, %v305
    %v403 = vpop.permute.xlu0 %402
    %405 = vset.pattern.permute.xlu0 2
    %406 = vperm.xlu0 %405, %v306
    %v407 = vpop.permute.xlu0 %406
    %409 = vset.pattern.permute.xlu0 2
    %410 = vperm.xlu0 %409, %v307
    %v411 = vpop.permute.xlu0 %410
    %413 = vset.pattern.permute.xlu0 2
    %414 = vperm.xlu0 %413, %v308
    %v415 = vpop.permute.xlu0 %414
    %417 = vset.pattern.permute.xlu0 2
    %418 = vperm.xlu0 %417, %v309
    %v419 = vpop.permute.xlu0 %418
    %421 = vset.pattern.permute.xlu0 2
    %422 = vperm.xlu0 %421, %v310
    %v423 = vpop.permute.xlu0 %422
    %425 = vset.pattern.permute.xlu0 2
    %426 = vperm.xlu0 %425, %v311
    %v427 = vpop.permute.xlu0 %426
    %429 = vset.pattern.permute.xlu0 2
    %430 = vperm.xlu0 %429, %v312
    %v431 = vpop.permute.xlu0 %430
    %v433 = vmul.f32 %v297, %v403
    %v434 = vmul.f32 %v298, %v407
    %v435 = vmul.f32 %v299, %v411
    %v436 = vmul.f32 %v300, %v415
    %v437 = vmul.f32 %v301, %v419
    %v438 = vmul.f32 %v302, %v423
    %v439 = vmul.f32 %v303, %v427
    %v440 = vmul.f32 %v304, %v431
    %449 = vrot.lane.b32.xlu0 %v393, 8
    %v450 = vpop.permute.xlu0 %449
    %451 = vrot.lane.b32.xlu0 %v394, 8
    %v452 = vpop.permute.xlu0 %451
    %453 = vrot.lane.b32.xlu0 %v395, 8
    %v454 = vpop.permute.xlu0 %453
    %455 = vrot.lane.b32.xlu0 %v396, 8
    %v456 = vpop.permute.xlu0 %455
    %457 = vrot.lane.b32.xlu0 %v397, 8
    %v458 = vpop.permute.xlu0 %457
    %459 = vrot.lane.b32.xlu0 %v398, 8
    %v460 = vpop.permute.xlu0 %459
    %461 = vrot.lane.b32.xlu0 %v399, 8
    %v462 = vpop.permute.xlu0 %461
    %463 = vrot.lane.b32.xlu0 %v400, 8
    %v464 = vpop.permute.xlu0 %463
    %481 = vrot.lane.b32.xlu0 %v433, 16
    %v482 = vpop.permute.xlu0 %481
    %483 = vrot.lane.b32.xlu0 %v434, 16
    %v484 = vpop.permute.xlu0 %483
    %485 = vrot.lane.b32.xlu0 %v435, 16
    %v486 = vpop.permute.xlu0 %485
    %487 = vrot.lane.b32.xlu0 %v436, 16
    %v488 = vpop.permute.xlu0 %487
    %489 = vrot.lane.b32.xlu0 %v437, 16
    %v490 = vpop.permute.xlu0 %489
    %491 = vrot.lane.b32.xlu0 %v438, 16
    %v492 = vpop.permute.xlu0 %491
    %493 = vrot.lane.b32.xlu0 %v439, 16
    %v494 = vpop.permute.xlu0 %493
    %495 = vrot.lane.b32.xlu0 %v440, 16
    %v496 = vpop.permute.xlu0 %495
    %v505 = vsel %vm115, %v353, %v450
    %v506 = vsel %vm115, %v354, %v452
    %v507 = vsel %vm115, %v355, %v454
    %v508 = vsel %vm115, %v356, %v456
    %v509 = vsel %vm115, %v357, %v458
    %v510 = vsel %vm115, %v358, %v460
    %v511 = vsel %vm115, %v359, %v462
    %v512 = vsel %vm115, %v360, %v464
    %vm513 = vcmask 130048
    %v514 = vsel %vm513, %v505, %v482
    %v515 = vsel %vm513, %v506, %v484
    %v516 = vsel %vm513, %v507, %v486
    %v517 = vsel %vm513, %v508, %v488
    %v518 = vsel %vm513, %v509, %v490
    %v519 = vsel %vm513, %v510, %v492
    %v520 = vsel %vm513, %v511, %v494
    %v521 = vsel %vm513, %v512, %v496
    %531 = vrot.lane.b32.xlu0 %v514, 8
    %v532 = vpop.permute.xlu0 %531
    %533 = vrot.lane.b32.xlu0 %v515, 8
    %v534 = vpop.permute.xlu0 %533
    %535 = vrot.lane.b32.xlu0 %v516, 8
    %v536 = vpop.permute.xlu0 %535
    %537 = vrot.lane.b32.xlu0 %v517, 8
    %v538 = vpop.permute.xlu0 %537
    %539 = vrot.lane.b32.xlu0 %v518, 8
    %v540 = vpop.permute.xlu0 %539
    %541 = vrot.lane.b32.xlu0 %v519, 8
    %v542 = vpop.permute.xlu0 %541
    %543 = vrot.lane.b32.xlu0 %v520, 8
    %v544 = vpop.permute.xlu0 %543
    %545 = vrot.lane.b32.xlu0 %v521, 8
    %v546 = vpop.permute.xlu0 %545
    %547 = vrot.lane.b32.xlu0 0.0, 8
    %v548 = vpop.permute.xlu0 %547
    %v558 = vsel %vm115, %v277, %v532
    %v559 = vsel %vm115, %v278, %v534
    %v560 = vsel %vm115, %v279, %v536
    %v561 = vsel %vm115, %v280, %v538
    %v562 = vsel %vm115, %v281, %v540
    %v563 = vsel %vm115, %v282, %v542
    %v564 = vsel %vm115, %v283, %v544
    %v565 = vsel %vm115, %v284, %v546
    %v566 = vsel %vm115, %v285, %v548
    %v567 = vsel %vm115, %v286, %v548
    %v568 = vsel %vm115, %v287, %v548
    %v569 = vsel %vm115, %v288, %v548
    %v570 = vld [vmem:[%s3] sm:$0xff]
    %v571 = vld [vmem:[%s3 + $0x8] sm:$0xff]
    %v572 = vld [vmem:[%s3 + $0x10] sm:$0xff]
    %v573 = vld [vmem:[%s3 + $0x18] sm:$0xff]
    %v574 = vld [vmem:[%s3 + $0x20] sm:$0xff]
    %v575 = vld [vmem:[%s3 + $0x28] sm:$0xff]
    %v576 = vld [vmem:[%s3 + $0x30] sm:$0xff]
    %v577 = vld [vmem:[%s3 + $0x38] sm:$0xff]
    %v578 = vld [vmem:[%s3 + $0x40] sm:$0xff]
    %v579 = vld [vmem:[%s3 + $0x48] sm:$0xff]
    %v580 = vld [vmem:[%s3 + $0x50] sm:$0xff]
    %v581 = vld [vmem:[%s3 + $0x58] sm:$0xff]
    %vm582 = vcmask 785408
    %v584 = vsel %vm582, %v570, 0
    %v587 = vsel %vm582, %v571, 0
    %v590 = vsel %vm582, %v572, 0
    %v593 = vsel %vm582, %v573, 0
    %v596 = vsel %vm582, %v574, 0
    %v599 = vsel %vm582, %v575, 0
    %v602 = vsel %vm582, %v576, 0
    %v605 = vsel %vm582, %v577, 0
    %v608 = vsel %vm582, %v578, 0
    %v611 = vsel %vm582, %v579, 0
    %v614 = vsel %vm582, %v580, 0
    %v617 = vsel %vm582, %v581, 0
    %619 = vmatprep.subr.mxu0 0.0
    %620 = vmatpush1.msra.mxu0 %v558
    %621 = vmatprep.subr.mxu0 0.0
    %622 = vmatpush1.msra.mxu0 %v559
    %623 = vmatprep.subr.mxu0 0.0
    %624 = vmatpush1.msra.mxu0 %v560
    %625 = vmatprep.subr.mxu0 0.0
    %626 = vmatpush1.msra.mxu0 %v561
    %627 = vmatprep.subr.mxu0 0.0
    %628 = vmatpush1.msra.mxu0 %v562
    %629 = vmatprep.subr.mxu0 0.0
    %630 = vmatpush1.msra.mxu0 %v563
    %631 = vmatprep.subr.mxu0 0.0
    %632 = vmatpush1.msra.mxu0 %v564
    %633 = vmatprep.subr.mxu0 0.0
    %634 = vmatpush1.msra.mxu0 %v565
    %635 = vmatprep.subr.mxu0 0.0
    %636 = vmatpush1.msra.mxu0 %v566
    %637 = vmatprep.subr.mxu0 0.0
    %638 = vmatpush1.msra.mxu0 %v567
    %639 = vmatprep.subr.mxu0 0.0
    %640 = vmatpush1.msra.mxu0 %v568
    %641 = vmatprep.subr.mxu0 0.0
    %642 = vmatpush1.msra.mxu0 %v569
    %643 = vmatprep.subr.mxu0 0.0
    %644 = vmatpush1.msra.mxu0 0.0
    %645 = vmatprep.subr.mxu0 0.0
    %646 = vmatpush1.msra.mxu0 0.0
    %647 = vmatprep.subr.mxu0 0.0
    %648 = vmatpush1.msra.mxu0 0.0
    %649 = vmatprep.subr.mxu0 0.0
    %650 = vmatpush1.msra.mxu0 0.0
    %651 = vmatprep.subr.mxu0 0.0
    %652 = vmatpush1.msra.mxu0 0.0
    %653 = vmatprep.subr.mxu0 0.0
    %654 = vmatpush1.msra.mxu0 0.0
    %655 = vmatprep.subr.mxu0 0.0
    %656 = vmatpush1.msra.mxu0 0.0
    %657 = vmatprep.subr.mxu0 0.0
    %658 = vmatpush1.msra.mxu0 0.0
    %659 = vmatprep.subr.mxu0 0.0
    %660 = vmatpush1.msra.mxu0 0.0
    %661 = vmatprep.subr.mxu0 0.0
    %662 = vmatpush1.msra.mxu0 0.0
    %663 = vmatprep.subr.mxu0 0.0
    %664 = vmatpush1.msra.mxu0 0.0
    %665 = vmatprep.subr.mxu0 0.0
    %666 = vmatpush1.msra.mxu0 0.0
    %667 = vmatprep.subr.mxu0 0.0
    %668 = vmatpush1.msra.mxu0 0.0
    %669 = vmatprep.subr.mxu0 0.0
    %670 = vmatpush1.msra.mxu0 0.0
    %671 = vmatprep.subr.mxu0 0.0
    %672 = vmatpush1.msra.mxu0 0.0
    %673 = vmatprep.subr.mxu0 0.0
    %674 = vmatpush1.msra.mxu0 0.0
    %675 = vmatprep.subr.mxu0 0.0
    %676 = vmatpush1.msra.mxu0 0.0
    %677 = vmatprep.subr.mxu0 0.0
    %678 = vmatpush1.msra.mxu0 0.0
    %679 = vmatprep.subr.mxu0 0.0
    %680 = vmatpush1.msra.mxu0 0.0
    %681 = vmatprep.subr.mxu0 0.0
    %682 = vmatpush1.msra.mxu0 0.0
    %683 = vmatprep.mubr.f32.mxu0 0.0
    %684 = vmatmul.mubr.f32.gmra.mrb[0].mxu0 %v584
    %v685 = vpop.f32.mrb[0].mxu0
    %v686 = vadd.f32 0.0, %v685
    %v687 = vpop.f32.mrb[0].mxu0
    %688 = vmatprep.mubr.f32.mxu0 0.0
    %689 = vmatmul.mubr.f32.gmra.mrb[0].mxu0 %v587
    %v690 = vpop.f32.mrb[0].mxu0
    %v691 = vadd.f32 0.0, %v690
    %v692 = vpop.f32.mrb[0].mxu0
    %693 = vmatprep.mubr.f32.mxu0 0.0
    %694 = vmatmul.mubr.f32.gmra.mrb[0].mxu0 %v590
    %v695 = vpop.f32.mrb[0].mxu0
    %v696 = vadd.f32 0.0, %v695
    %v697 = vpop.f32.mrb[0].mxu0
    %698 = vmatprep.mubr.f32.mxu0 0.0
    %699 = vmatmul.mubr.f32.gmra.mrb[0].mxu0 %v593
    %v700 = vpop.f32.mrb[0].mxu0
    %v701 = vadd.f32 0.0, %v700
    %v702 = vpop.f32.mrb[0].mxu0
    %703 = vmatprep.mubr.f32.mxu0 0.0
    %704 = vmatmul.mubr.f32.gmra.mrb[0].mxu0 %v596
    %v705 = vpop.f32.mrb[0].mxu0
    %v706 = vadd.f32 0.0, %v705
    %v707 = vpop.f32.mrb[0].mxu0
    %708 = vmatprep.mubr.f32.mxu0 0.0
    %709 = vmatmul.mubr.f32.gmra.mrb[0].mxu0 %v599
    %v710 = vpop.f32.mrb[0].mxu0
    %v711 = vadd.f32 0.0, %v710
    %v712 = vpop.f32.mrb[0].mxu0
    %713 = vmatprep.mubr.f32.mxu0 0.0
    %714 = vmatmul.mubr.f32.gmra.mrb[0].mxu0 %v602
    %v715 = vpop.f32.mrb[0].mxu0
    %v716 = vadd.f32 0.0, %v715
    %v717 = vpop.f32.mrb[0].mxu0
    %718 = vmatprep.mubr.f32.mxu0 0.0
    %719 = vmatmul.mubr.f32.gmra.mrb[0].mxu0 %v605
    %v720 = vpop.f32.mrb[0].mxu0
    %v721 = vadd.f32 0.0, %v720
    %v722 = vpop.f32.mrb[0].mxu0
    %723 = vmatprep.mubr.f32.mxu0 0.0
    %724 = vmatmul.mubr.f32.gmra.mrb[0].mxu0 %v608
    %v725 = vpop.f32.mrb[0].mxu0
    %v726 = vadd.f32 0.0, %v725
    %v727 = vpop.f32.mrb[0].mxu0
    %728 = vmatprep.mubr.f32.mxu0 0.0
    %729 = vmatmul.mubr.f32.gmra.mrb[0].mxu0 %v611
    %v730 = vpop.f32.mrb[0].mxu0
    %v731 = vadd.f32 0.0, %v730
    %v732 = vpop.f32.mrb[0].mxu0
    %733 = vmatprep.mubr.f32.mxu0 0.0
    %734 = vmatmul.mubr.f32.gmra.mrb[0].mxu0 %v614
    %v735 = vpop.f32.mrb[0].mxu0
    %v736 = vadd.f32 0.0, %v735
    %v737 = vpop.f32.mrb[0].mxu0
    %738 = vmatprep.mubr.f32.mxu0 0.0
    %739 = vmatmul.mubr.f32.gmra.mrb[0].mxu0 %v617
    %v740 = vpop.f32.mrb[0].mxu0
    %v741 = vadd.f32 0.0, %v740
    %v742 = vpop.f32.mrb[0].mxu0
    %743 = vdwg.mxu0
    %v744 = vld [vmem:[%s4] sm:$0xff]
    %v745 = vld [vmem:[%s4 + $0x8] sm:$0xff]
    %v746 = vld [vmem:[%s4 + $0x10] sm:$0xff]
    %v747 = vld [vmem:[%s4 + $0x18] sm:$0xff]
    %v748 = vld [vmem:[%s4 + $0x20] sm:$0xff]
    %v749 = vld [vmem:[%s4 + $0x28] sm:$0xff]
    %v750 = vld [vmem:[%s4 + $0x30] sm:$0xff]
    %v751 = vld [vmem:[%s4 + $0x38] sm:$0xff]
    %v752 = vld [vmem:[%s4 + $0x40] sm:$0xff]
    %v753 = vld [vmem:[%s4 + $0x48] sm:$0xff]
    %v754 = vld [vmem:[%s4 + $0x50] sm:$0xff]
    %v755 = vld [vmem:[%s4 + $0x58] sm:$0xff]
    %757 = vset.pattern.permute.xlu0 0
    %758 = vperm.xlu0 %757, %v744
    %v759 = vpop.permute.xlu0 %758
    %762 = vset.pattern.permute.xlu0 0
    %763 = vperm.xlu0 %762, %v745
    %v764 = vpop.permute.xlu0 %763
    %767 = vset.pattern.permute.xlu0 0
    %768 = vperm.xlu0 %767, %v746
    %v769 = vpop.permute.xlu0 %768
    %772 = vset.pattern.permute.xlu0 0
    %773 = vperm.xlu0 %772, %v747
    %v774 = vpop.permute.xlu0 %773
    %777 = vset.pattern.permute.xlu0 0
    %778 = vperm.xlu0 %777, %v748
    %v779 = vpop.permute.xlu0 %778
    %782 = vset.pattern.permute.xlu0 0
    %783 = vperm.xlu0 %782, %v749
    %v784 = vpop.permute.xlu0 %783
    %787 = vset.pattern.permute.xlu0 0
    %788 = vperm.xlu0 %787, %v750
    %v789 = vpop.permute.xlu0 %788
    %792 = vset.pattern.permute.xlu0 0
    %793 = vperm.xlu0 %792, %v751
    %v794 = vpop.permute.xlu0 %793
    %797 = vset.pattern.permute.xlu0 0
    %798 = vperm.xlu0 %797, %v752
    %v799 = vpop.permute.xlu0 %798
    %802 = vset.pattern.permute.xlu0 0
    %803 = vperm.xlu0 %802, %v753
    %v804 = vpop.permute.xlu0 %803
    %807 = vset.pattern.permute.xlu0 0
    %808 = vperm.xlu0 %807, %v754
    %v809 = vpop.permute.xlu0 %808
    %812 = vset.pattern.permute.xlu0 0
    %813 = vperm.xlu0 %812, %v755
    %v814 = vpop.permute.xlu0 %813
    %v816 = vadd.f32 %v686, %v759
    %v817 = vadd.f32 %v691, %v764
    %v818 = vadd.f32 %v696, %v769
    %v819 = vadd.f32 %v701, %v774
    %v820 = vadd.f32 %v706, %v779
    %v821 = vadd.f32 %v711, %v784
    %v822 = vadd.f32 %v716, %v789
    %v823 = vadd.f32 %v721, %v794
    %v824 = vadd.f32 %v726, %v799
    %v825 = vadd.f32 %v731, %v804
    %v826 = vadd.f32 %v736, %v809
    %v827 = vadd.f32 %v741, %v814
    %v828 = vtanh.pop %v816
    %v829 = vtanh.pop %v817
    %v830 = vtanh.pop %v818
    %v831 = vtanh.pop %v819
    %v832 = vtanh.pop %v820
    %v833 = vtanh.pop %v821
    %v834 = vtanh.pop %v822
    %v835 = vtanh.pop %v823
    %v836 = vtanh.pop %v824
    %v837 = vtanh.pop %v825
    %v838 = vtanh.pop %v826
    %v839 = vtanh.pop %v827
    %v840 = vmul.f32 %v828, %v828
    %v841 = vmul.f32 %v829, %v829
    %v842 = vmul.f32 %v830, %v830
    %v843 = vmul.f32 %v831, %v831
    %v844 = vmul.f32 %v832, %v832
    %v845 = vmul.f32 %v833, %v833
    %v846 = vmul.f32 %v834, %v834
    %v847 = vmul.f32 %v835, %v835
    %v848 = vsub.f32 1.0, %v840
    %v849 = vsub.f32 1.0, %v841
    %v850 = vsub.f32 1.0, %v842
    %v851 = vsub.f32 1.0, %v843
    %v852 = vsub.f32 1.0, %v844
    %v853 = vsub.f32 1.0, %v845
    %v854 = vsub.f32 1.0, %v846
    %v855 = vsub.f32 1.0, %v847
    %864 = vrot.lane.b32.xlu0 %v686, 120
    %v865 = vpop.permute.xlu0 %864
    %866 = vrot.lane.b32.xlu0 %v691, 120
    %v867 = vpop.permute.xlu0 %866
    %868 = vrot.lane.b32.xlu0 %v696, 120
    %v869 = vpop.permute.xlu0 %868
    %870 = vrot.lane.b32.xlu0 %v701, 120
    %v871 = vpop.permute.xlu0 %870
    %872 = vrot.lane.b32.xlu0 %v706, 120
    %v873 = vpop.permute.xlu0 %872
    %874 = vrot.lane.b32.xlu0 %v711, 120
    %v875 = vpop.permute.xlu0 %874
    %876 = vrot.lane.b32.xlu0 %v716, 120
    %v877 = vpop.permute.xlu0 %876
    %878 = vrot.lane.b32.xlu0 %v721, 120
    %v879 = vpop.permute.xlu0 %878
    %v888 = vmul.f32 %v848, %v865
    %v889 = vmul.f32 %v849, %v867
    %v890 = vmul.f32 %v850, %v869
    %v891 = vmul.f32 %v851, %v871
    %v892 = vmul.f32 %v852, %v873
    %v893 = vmul.f32 %v853, %v875
    %v894 = vmul.f32 %v854, %v877
    %v895 = vmul.f32 %v855, %v879
    %896 = vrot.lane.b32.xlu0 %v686, 112
    %v897 = vpop.permute.xlu0 %896
    %898 = vrot.lane.b32.xlu0 %v691, 112
    %v899 = vpop.permute.xlu0 %898
    %900 = vrot.lane.b32.xlu0 %v696, 112
    %v901 = vpop.permute.xlu0 %900
    %902 = vrot.lane.b32.xlu0 %v701, 112
    %v903 = vpop.permute.xlu0 %902
    %904 = vrot.lane.b32.xlu0 %v706, 112
    %v905 = vpop.permute.xlu0 %904
    %906 = vrot.lane.b32.xlu0 %v711, 112
    %v907 = vpop.permute.xlu0 %906
    %908 = vrot.lane.b32.xlu0 %v716, 112
    %v909 = vpop.permute.xlu0 %908
    %910 = vrot.lane.b32.xlu0 %v721, 112
    %v911 = vpop.permute.xlu0 %910
    %v920 = vmul.f32 %v848, %v897
    %v921 = vmul.f32 %v849, %v899
    %v922 = vmul.f32 %v850, %v901
    %v923 = vmul.f32 %v851, %v903
    %v924 = vmul.f32 %v852, %v905
    %v925 = vmul.f32 %v853, %v907
    %v926 = vmul.f32 %v854, %v909
    %v927 = vmul.f32 %v855, %v911
    %928 = vrot.lane.b32.xlu0 %v686, 104
    %v929 = vpop.permute.xlu0 %928
    %930 = vrot.lane.b32.xlu0 %v691, 104
    %v931 = vpop.permute.xlu0 %930
    %932 = vrot.lane.b32.xlu0 %v696, 104
    %v933 = vpop.permute.xlu0 %932
    %934 = vrot.lane.b32.xlu0 %v701, 104
    %v935 = vpop.permute.xlu0 %934
    %936 = vrot.lane.b32.xlu0 %v706, 104
    %v937 = vpop.permute.xlu0 %936
    %938 = vrot.lane.b32.xlu0 %v711, 104
    %v939 = vpop.permute.xlu0 %938
    %940 = vrot.lane.b32.xlu0 %v716, 104
    %v941 = vpop.permute.xlu0 %940
    %942 = vrot.lane.b32.xlu0 %v721, 104
    %v943 = vpop.permute.xlu0 %942
    %v952 = vmul.f32 %v848, %v929
    %v953 = vmul.f32 %v849, %v931
    %v954 = vmul.f32 %v850, %v933
    %v955 = vmul.f32 %v851, %v935
    %v956 = vmul.f32 %v852, %v937
    %v957 = vmul.f32 %v853, %v939
    %v958 = vmul.f32 %v854, %v941
    %v959 = vmul.f32 %v855, %v943
    %968 = vrot.lane.b32.xlu0 %v920, 8
    %v969 = vpop.permute.xlu0 %968
    %970 = vrot.lane.b32.xlu0 %v921, 8
    %v971 = vpop.permute.xlu0 %970
    %972 = vrot.lane.b32.xlu0 %v922, 8
    %v973 = vpop.permute.xlu0 %972
    %974 = vrot.lane.b32.xlu0 %v923, 8
    %v975 = vpop.permute.xlu0 %974
    %976 = vrot.lane.b32.xlu0 %v924, 8
    %v977 = vpop.permute.xlu0 %976
    %978 = vrot.lane.b32.xlu0 %v925, 8
    %v979 = vpop.permute.xlu0 %978
    %980 = vrot.lane.b32.xlu0 %v926, 8
    %v981 = vpop.permute.xlu0 %980
    %982 = vrot.lane.b32.xlu0 %v927, 8
    %v983 = vpop.permute.xlu0 %982
    %1000 = vrot.lane.b32.xlu0 %v952, 16
    %v1001 = vpop.permute.xlu0 %1000
    %1002 = vrot.lane.b32.xlu0 %v953, 16
    %v1003 = vpop.permute.xlu0 %1002
    %1004 = vrot.lane.b32.xlu0 %v954, 16
    %v1005 = vpop.permute.xlu0 %1004
    %1006 = vrot.lane.b32.xlu0 %v955, 16
    %v1007 = vpop.permute.xlu0 %1006
    %1008 = vrot.lane.b32.xlu0 %v956, 16
    %v1009 = vpop.permute.xlu0 %1008
    %1010 = vrot.lane.b32.xlu0 %v957, 16
    %v1011 = vpop.permute.xlu0 %1010
    %1012 = vrot.lane.b32.xlu0 %v958, 16
    %v1013 = vpop.permute.xlu0 %1012
    %1014 = vrot.lane.b32.xlu0 %v959, 16
    %v1015 = vpop.permute.xlu0 %1014
    %v1024 = vsel %vm115, %v888, %v969
    %v1025 = vsel %vm115, %v889, %v971
    %v1026 = vsel %vm115, %v890, %v973
    %v1027 = vsel %vm115, %v891, %v975
    %v1028 = vsel %vm115, %v892, %v977
    %v1029 = vsel %vm115, %v893, %v979
    %v1030 = vsel %vm115, %v894, %v981
    %v1031 = vsel %vm115, %v895, %v983
    %v1032 = vsel %vm513, %v1024, %v1001
    %v1033 = vsel %vm513, %v1025, %v1003
    %v1034 = vsel %vm513, %v1026, %v1005
    %v1035 = vsel %vm513, %v1027, %v1007
    %v1036 = vsel %vm513, %v1028, %v1009
    %v1037 = vsel %vm513, %v1029, %v1011
    %v1038 = vsel %vm513, %v1030, %v1013
    %v1039 = vsel %vm513, %v1031, %v1015
    %1048 = vrot.lane.b32.xlu0 %v1032, 8
    %v1049 = vpop.permute.xlu0 %1048
    %1050 = vrot.lane.b32.xlu0 %v1033, 8
    %v1051 = vpop.permute.xlu0 %1050
    %1052 = vrot.lane.b32.xlu0 %v1034, 8
    %v1053 = vpop.permute.xlu0 %1052
    %1054 = vrot.lane.b32.xlu0 %v1035, 8
    %v1055 = vpop.permute.xlu0 %1054
    %1056 = vrot.lane.b32.xlu0 %v1036, 8
    %v1057 = vpop.permute.xlu0 %1056
    %1058 = vrot.lane.b32.xlu0 %v1037, 8
    %v1059 = vpop.permute.xlu0 %1058
    %1060 = vrot.lane.b32.xlu0 %v1038, 8
    %v1061 = vpop.permute.xlu0 %1060
    %1062 = vrot.lane.b32.xlu0 %v1039, 8
    %v1063 = vpop.permute.xlu0 %1062
    %v1072 = vsel %vm115, %v828, %v1049
    %v1073 = vsel %vm115, %v829, %v1051
    %v1074 = vsel %vm115, %v830, %v1053
    %v1075 = vsel %vm115, %v831, %v1055
    %v1076 = vsel %vm115, %v832, %v1057
    %v1077 = vsel %vm115, %v833, %v1059
    %v1078 = vsel %vm115, %v834, %v1061
    %v1079 = vsel %vm115, %v835, %v1063
    %v1080 = vsel %vm115, %v836, %v548
    %v1081 = vsel %vm115, %v837, %v548
    %v1082 = vsel %vm115, %v838, %v548
    %v1083 = vsel %vm115, %v839, %v548
    %v1084 = vld [vmem:[%s5] sm:$0xff]
    %v1085 = vld [vmem:[%s5 + $0x8] sm:$0x3]
    %v1087 = vsel %vm582, %v1084, 0
    %v1090 = vsel %vm582, %v1085, 0
    %1092 = vmatprep.subr.mxu0 0.0
    %1093 = vmatpush1.msra.mxu0 %v1072
    %1094 = vmatprep.subr.mxu0 0.0
    %1095 = vmatpush1.msra.mxu0 %v1073
    %1096 = vmatprep.subr.mxu0 0.0
    %1097 = vmatpush1.msra.mxu0 %v1074
    %1098 = vmatprep.subr.mxu0 0.0
    %1099 = vmatpush1.msra.mxu0 %v1075
    %1100 = vmatprep.subr.mxu0 0.0
    %1101 = vmatpush1.msra.mxu0 %v1076
    %1102 = vmatprep.subr.mxu0 0.0
    %1103 = vmatpush1.msra.mxu0 %v1077
    %1104 = vmatprep.subr.mxu0 0.0
    %1105 = vmatpush1.msra.mxu0 %v1078
    %1106 = vmatprep.subr.mxu0 0.0
    %1107 = vmatpush1.msra.mxu0 %v1079
    %1108 = vmatprep.subr.mxu0 0.0
    %1109 = vmatpush1.msra.mxu0 %v1080
    %1110 = vmatprep.subr.mxu0 0.0
    %1111 = vmatpush1.msra.mxu0 %v1081
    %1112 = vmatprep.subr.mxu0 0.0
    %1113 = vmatpush1.msra.mxu0 %v1082
    %1114 = vmatprep.subr.mxu0 0.0
    %1115 = vmatpush1.msra.mxu0 %v1083
    %1116 = vmatprep.subr.mxu0 0.0
    %1117 = vmatpush1.msra.mxu0 0.0
    %1118 = vmatprep.subr.mxu0 0.0
    %1119 = vmatpush1.msra.mxu0 0.0
    %1120 = vmatprep.subr.mxu0 0.0
    %1121 = vmatpush1.msra.mxu0 0.0
    %1122 = vmatprep.subr.mxu0 0.0
    %1123 = vmatpush1.msra.mxu0 0.0
    %1124 = vmatprep.subr.mxu0 0.0
    %1125 = vmatpush1.msra.mxu0 0.0
    %1126 = vmatprep.subr.mxu0 0.0
    %1127 = vmatpush1.msra.mxu0 0.0
    %1128 = vmatprep.subr.mxu0 0.0
    %1129 = vmatpush1.msra.mxu0 0.0
    %1130 = vmatprep.subr.mxu0 0.0
    %1131 = vmatpush1.msra.mxu0 0.0
    %1132 = vmatprep.subr.mxu0 0.0
    %1133 = vmatpush1.msra.mxu0 0.0
    %1134 = vmatprep.subr.mxu0 0.0
    %1135 = vmatpush1.msra.mxu0 0.0
    %1136 = vmatprep.subr.mxu0 0.0
    %1137 = vmatpush1.msra.mxu0 0.0
    %1138 = vmatprep.subr.mxu0 0.0
    %1139 = vmatpush1.msra.mxu0 0.0
    %1140 = vmatprep.subr.mxu0 0.0
    %1141 = vmatpush1.msra.mxu0 0.0
    %1142 = vmatprep.subr.mxu0 0.0
    %1143 = vmatpush1.msra.mxu0 0.0
    %1144 = vmatprep.subr.mxu0 0.0
    %1145 = vmatpush1.msra.mxu0 0.0
    %1146 = vmatprep.subr.mxu0 0.0
    %1147 = vmatpush1.msra.mxu0 0.0
    %1148 = vmatprep.subr.mxu0 0.0
    %1149 = vmatpush1.msra.mxu0 0.0
    %1150 = vmatprep.subr.mxu0 0.0
    %1151 = vmatpush1.msra.mxu0 0.0
    %1152 = vmatprep.subr.mxu0 0.0
    %1153 = vmatpush1.msra.mxu0 0.0
    %1154 = vmatprep.subr.mxu0 0.0
    %1155 = vmatpush1.msra.mxu0 0.0
    %1156 = vmatprep.mubr.f32.mxu0 0.0
    %1157 = vmatmul.mubr.f32.gmra.mrb[0].mxu0 %v1087
    %v1158 = vpop.f32.mrb[0].mxu0
    %v1159 = vadd.f32 0.0, %v1158
    %v1160 = vpop.f32.mrb[0].mxu0
    %1161 = vmatprep.mubr.f32.mxu0 0.0
    %1162 = vmatmul.mubr.f32.gmra.mrb[0].mxu0 %v1090
    %v1163 = vpop.f32.mrb[0].mxu0
    %v1164 = vadd.f32 0.0, %v1163
    %v1165 = vpop.f32.mrb[0].mxu0
    %1166 = vdwg.mxu0
    %v1167 = vld [vmem:[%s6] sm:$0xff]
    %v1168 = vld [vmem:[%s6 + $0x8] sm:$0x3]
    %1170 = vset.pattern.permute.xlu0 0
    %1171 = vperm.xlu0 %1170, %v1167
    %v1172 = vpop.permute.xlu0 %1171
    %1175 = vset.pattern.permute.xlu0 0
    %1176 = vperm.xlu0 %1175, %v1168
    %v1177 = vpop.permute.xlu0 %1176
    %v1179 = vadd.f32 %v1159, %v1172
    %v1180 = vadd.f32 %v1164, %v1177
    %v1182 = vrot.slane %v30, 3
    %v1184 = vmul.f32 %v1179, %v1182
    %v1185 = vrot.slane %v30, 1
    %v1187 = vmul.f32 %v1179, %v1185
    %v1189 = vrot.slane %v1187, 3
    %v1191 = vadd.f32 %v1184, %v1189
    %v1192 = vrot.slane %v1187, 4
    %v1194 = vadd.f32 %v1191, %v1192
    %v1195 = vmul.f32 %v1179, %v30
    %v1197 = vrot.slane %v1195, 4
    %v1199 = vadd.f32 %v1184, %v1197
    %1200 = vrot.lane.b32.xlu0 %v1182, 8
    %v1201 = vpop.permute.xlu0 %1200
    %v1203 = vmul.f32 %v1159, %v1201
    %1204 = vrot.lane.b32.xlu0 %v1185, 8
    %v1205 = vpop.permute.xlu0 %1204
    %v1207 = vmul.f32 %v1159, %v1205
    %v1209 = vrot.slane %v1207, 3
    %v1211 = vadd.f32 %v1203, %v1209
    %v1212 = vrot.slane %v1207, 4
    %v1214 = vadd.f32 %v1211, %v1212
    %1215 = vrot.lane.b32.xlu0 %v30, 8
    %v1216 = vpop.permute.xlu0 %1215
    %v1218 = vmul.f32 %v1159, %v1216
    %v1220 = vrot.slane %v1218, 4
    %v1222 = vadd.f32 %v1203, %v1220
    %1224 = vrot.lane.b32.xlu0 %v1194, 8
    %v1225 = vpop.permute.xlu0 %1224
    %v1227 = vmul.f32 %v1159, %v1225
    %1229 = vrot.lane.b32.xlu0 %v1199, 8
    %v1230 = vpop.permute.xlu0 %1229
    %v1232 = vmul.f32 %v1159, %v1230
    %1234 = vrot.lane.b32.xlu0 %v1184, 8
    %v1235 = vpop.permute.xlu0 %1234
    %v1237 = vmul.f32 %v1159, %v1235
    %v1238 = vrot.slane %v1194, 5
    %1239 = vrot.lane.b32.xlu0 %v1238, 8
    %v1240 = vpop.permute.xlu0 %1239
    %v1242 = vmul.f32 %v1159, %v1240
    %v1244 = vrot.slane %v1242, 2
    %v1246 = vadd.f32 %v1232, %v1244
    %v1247 = vrot.slane %v1194, 4
    %1248 = vrot.lane.b32.xlu0 %v1247, 8
    %v1249 = vpop.permute.xlu0 %1248
    %v1251 = vmul.f32 %v1159, %v1249
    %v1253 = vrot.slane %v1251, 2
    %v1255 = vadd.f32 %v1237, %v1253
    %v1256 = vrot.slane %v1199, 4
    %1257 = vrot.lane.b32.xlu0 %v1256, 8
    %v1258 = vpop.permute.xlu0 %1257
    %v1260 = vmul.f32 %v1159, %v1258
    %v1262 = vrot.slane %v1260, 3
    %v1264 = vadd.f32 %v1255, %v1262
    %1266 = vrot.lane.b32.xlu0 %v1214, 120
    %v1267 = vpop.permute.xlu0 %1266
    %v1269 = vmul.f32 %v1179, %v1267
    %1271 = vrot.lane.b32.xlu0 %v1222, 120
    %v1272 = vpop.permute.xlu0 %1271
    %v1274 = vmul.f32 %v1179, %v1272
    %1276 = vrot.lane.b32.xlu0 %v1203, 120
    %v1277 = vpop.permute.xlu0 %1276
    %v1279 = vmul.f32 %v1179, %v1277
    %v1280 = vrot.slane %v1214, 5
    %1281 = vrot.lane.b32.xlu0 %v1280, 120
    %v1282 = vpop.permute.xlu0 %1281
    %v1284 = vmul.f32 %v1179, %v1282
    %v1286 = vrot.slane %v1284, 2
    %v1288 = vadd.f32 %v1274, %v1286
    %v1289 = vrot.slane %v1214, 4
    %1290 = vrot.lane.b32.xlu0 %v1289, 120
    %v1291 = vpop.permute.xlu0 %1290
    %v1293 = vmul.f32 %v1179, %v1291
    %v1295 = vrot.slane %v1293, 2
    %v1297 = vadd.f32 %v1279, %v1295
    %v1298 = vrot.slane %v1222, 4
    %1299 = vrot.lane.b32.xlu0 %v1298, 120
    %v1300 = vpop.permute.xlu0 %1299
    %v1302 = vmul.f32 %v1179, %v1300
    %v1304 = vrot.slane %v1302, 3
    %v1306 = vadd.f32 %v1297, %v1304
    %1308 = vrot.lane.b32.xlu0 %v1269, 8
    %v1309 = vpop.permute.xlu0 %1308
    %v1311 = vadd.f32 %v1227, %v1309
    %1313 = vrot.lane.b32.xlu0 %v1288, 8
    %v1314 = vpop.permute.xlu0 %1313
    %v1316 = vadd.f32 %v1246, %v1314
    %1318 = vrot.lane.b32.xlu0 %v1306, 8
    %v1319 = vpop.permute.xlu0 %1318
    %v1321 = vadd.f32 %v1264, %v1319
    %1322 = vrot.lane.b32.xlu0 %v1182, 16
    %v1323 = vpop.permute.xlu0 %1322
    %v1325 = vmul.f32 %v1159, %v1323
    %1326 = vrot.lane.b32.xlu0 %v1185, 16
    %v1327 = vpop.permute.xlu0 %1326
    %v1329 = vmul.f32 %v1159, %v1327
    %v1331 = vrot.slane %v1329, 3
    %v1333 = vadd.f32 %v1325, %v1331
    %v1334 = vrot.slane %v1329, 4
    %v1336 = vadd.f32 %v1333, %v1334
    %1337 = vrot.lane.b32.xlu0 %v30, 16
    %v1338 = vpop.permute.xlu0 %1337
    %v1340 = vmul.f32 %v1159, %v1338
    %v1342 = vrot.slane %v1340, 4
    %v1344 = vadd.f32 %v1325, %v1342
    %1345 = vrot.lane.b32.xlu0 %v1194, 16
    %v1346 = vpop.permute.xlu0 %1345
    %v1348 = vmul.f32 %v1159, %v1346
    %1349 = vrot.lane.b32.xlu0 %v1199, 16
    %v1350 = vpop.permute.xlu0 %1349
    %v1352 = vmul.f32 %v1159, %v1350
    %1353 = vrot.lane.b32.xlu0 %v1184, 16
    %v1354 = vpop.permute.xlu0 %1353
    %v1356 = vmul.f32 %v1159, %v1354
    %1357 = vrot.lane.b32.xlu0 %v1238, 16
    %v1358 = vpop.permute.xlu0 %1357
    %v1360 = vmul.f32 %v1159, %v1358
    %v1362 = vrot.slane %v1360, 2
    %v1364 = vadd.f32 %v1352, %v1362
    %1365 = vrot.lane.b32.xlu0 %v1247, 16
    %v1366 = vpop.permute.xlu0 %1365
    %v1368 = vmul.f32 %v1159, %v1366
    %v1370 = vrot.slane %v1368, 2
    %v1372 = vadd.f32 %v1356, %v1370
    %1373 = vrot.lane.b32.xlu0 %v1256, 16
    %v1374 = vpop.permute.xlu0 %1373
    %v1376 = vmul.f32 %v1159, %v1374
    %v1378 = vrot.slane %v1376, 3
    %v1380 = vadd.f32 %v1372, %v1378
    %1382 = vrot.lane.b32.xlu0 %v1336, 112
    %v1383 = vpop.permute.xlu0 %1382
    %v1385 = vmul.f32 %v1179, %v1383
    %1387 = vrot.lane.b32.xlu0 %v1344, 112
    %v1388 = vpop.permute.xlu0 %1387
    %v1390 = vmul.f32 %v1179, %v1388
    %1392 = vrot.lane.b32.xlu0 %v1325, 112
    %v1393 = vpop.permute.xlu0 %1392
    %v1395 = vmul.f32 %v1179, %v1393
    %v1396 = vrot.slane %v1336, 5
    %1397 = vrot.lane.b32.xlu0 %v1396, 112
    %v1398 = vpop.permute.xlu0 %1397
    %v1400 = vmul.f32 %v1179, %v1398
    %v1402 = vrot.slane %v1400, 2
    %v1404 = vadd.f32 %v1390, %v1402
    %v1405 = vrot.slane %v1336, 4
    %1406 = vrot.lane.b32.xlu0 %v1405, 112
    %v1407 = vpop.permute.xlu0 %1406
    %v1409 = vmul.f32 %v1179, %v1407
    %v1411 = vrot.slane %v1409, 2
    %v1413 = vadd.f32 %v1395, %v1411
    %v1414 = vrot.slane %v1344, 4
    %1415 = vrot.lane.b32.xlu0 %v1414, 112
    %v1416 = vpop.permute.xlu0 %1415
    %v1418 = vmul.f32 %v1179, %v1416
    %v1420 = vrot.slane %v1418, 3
    %v1422 = vadd.f32 %v1413, %v1420
    %1424 = vrot.lane.b32.xlu0 %v1385, 16
    %v1425 = vpop.permute.xlu0 %1424
    %v1427 = vadd.f32 %v1348, %v1425
    %1429 = vrot.lane.b32.xlu0 %v1404, 16
    %v1430 = vpop.permute.xlu0 %1429
    %v1432 = vadd.f32 %v1364, %v1430
    %1434 = vrot.lane.b32.xlu0 %v1422, 16
    %v1435 = vpop.permute.xlu0 %1434
    %v1437 = vadd.f32 %v1380, %v1435
    %1438 = vrot.lane.b32.xlu0 %v1182, 24
    %v1439 = vpop.permute.xlu0 %1438
    %v1441 = vmul.f32 %v1159, %v1439
    %1442 = vrot.lane.b32.xlu0 %v1185, 24
    %v1443 = vpop.permute.xlu0 %1442
    %v1445 = vmul.f32 %v1159, %v1443
    %v1447 = vrot.slane %v1445, 3
    %v1449 = vadd.f32 %v1441, %v1447
    %v1450 = vrot.slane %v1445, 4
    %v1452 = vadd.f32 %v1449, %v1450
    %1453 = vrot.lane.b32.xlu0 %v30, 24
    %v1454 = vpop.permute.xlu0 %1453
    %v1456 = vmul.f32 %v1159, %v1454
    %v1458 = vrot.slane %v1456, 4
    %v1460 = vadd.f32 %v1441, %v1458
    %1461 = vrot.lane.b32.xlu0 %v1194, 24
    %v1462 = vpop.permute.xlu0 %1461
    %v1464 = vmul.f32 %v1159, %v1462
    %1465 = vrot.lane.b32.xlu0 %v1199, 24
    %v1466 = vpop.permute.xlu0 %1465
    %v1468 = vmul.f32 %v1159, %v1466
    %1469 = vrot.lane.b32.xlu0 %v1184, 24
    %v1470 = vpop.permute.xlu0 %1469
    %v1472 = vmul.f32 %v1159, %v1470
    %1473 = vrot.lane.b32.xlu0 %v1238, 24
    %v1474 = vpop.permute.xlu0 %1473
    %v1476 = vmul.f32 %v1159, %v1474
    %v1478 = vrot.slane %v1476, 2
    %v1480 = vadd.f32 %v1468, %v1478
    %1481 = vrot.lane.b32.xlu0 %v1247, 24
    %v1482 = vpop.permute.xlu0 %1481
    %v1484 = vmul.f32 %v1159, %v1482
    %v1486 = vrot.slane %v1484, 2
    %v1488 = vadd.f32 %v1472, %v1486
    %1489 = vrot.lane.b32.xlu0 %v1256, 24
    %v1490 = vpop.permute.xlu0 %1489
    %v1492 = vmul.f32 %v1159, %v1490
    %v1494 = vrot.slane %v1492, 3
    %v1496 = vadd.f32 %v1488, %v1494
    %1498 = vrot.lane.b32.xlu0 %v1452, 104
    %v1499 = vpop.permute.xlu0 %1498
    %v1501 = vmul.f32 %v1179, %v1499
    %1503 = vrot.lane.b32.xlu0 %v1460, 104
    %v1504 = vpop.permute.xlu0 %1503
    %v1506 = vmul.f32 %v1179, %v1504
    %1508 = vrot.lane.b32.xlu0 %v1441, 104
    %v1509 = vpop.permute.xlu0 %1508
    %v1511 = vmul.f32 %v1179, %v1509
    %v1512 = vrot.slane %v1452, 5
    %1513 = vrot.lane.b32.xlu0 %v1512, 104
    %v1514 = vpop.permute.xlu0 %1513
    %v1516 = vmul.f32 %v1179, %v1514
    %v1518 = vrot.slane %v1516, 2
    %v1520 = vadd.f32 %v1506, %v1518
    %v1521 = vrot.slane %v1452, 4
    %1522 = vrot.lane.b32.xlu0 %v1521, 104
    %v1523 = vpop.permute.xlu0 %1522
    %v1525 = vmul.f32 %v1179, %v1523
    %v1527 = vrot.slane %v1525, 2
    %v1529 = vadd.f32 %v1511, %v1527
    %v1530 = vrot.slane %v1460, 4
    %1531 = vrot.lane.b32.xlu0 %v1530, 104
    %v1532 = vpop.permute.xlu0 %1531
    %v1534 = vmul.f32 %v1179, %v1532
    %v1536 = vrot.slane %v1534, 3
    %v1538 = vadd.f32 %v1529, %v1536
    %1540 = vrot.lane.b32.xlu0 %v1501, 24
    %v1541 = vpop.permute.xlu0 %1540
    %v1543 = vadd.f32 %v1464, %v1541
    %1545 = vrot.lane.b32.xlu0 %v1520, 24
    %v1546 = vpop.permute.xlu0 %1545
    %v1548 = vadd.f32 %v1480, %v1546
    %1550 = vrot.lane.b32.xlu0 %v1538, 24
    %v1551 = vpop.permute.xlu0 %1550
    %v1553 = vadd.f32 %v1496, %v1551
    %v1555 = vrot.slane %v1311, 5
    %1556 = vrot.lane.b32.xlu0 %v1555, 120
    %v1557 = vpop.permute.xlu0 %1556
    %v1559 = vmul.f32 %v30, %v1557
    %v1560 = vadd.f32 %v1559, 0.0
    %v1562 = vrot.slane %v1427, 4
    %1563 = vrot.lane.b32.xlu0 %v1562, 112
    %v1564 = vpop.permute.xlu0 %1563
    %v1566 = vmul.f32 %v30, %v1564
    %v1568 = vrot.slane %v1566, 1
    %v1570 = vadd.f32 %v1560, %v1568
    %v1572 = vrot.slane %v1543, 3
    %1573 = vrot.lane.b32.xlu0 %v1572, 104
    %v1574 = vpop.permute.xlu0 %1573
    %v1576 = vmul.f32 %v30, %v1574
    %v1578 = vrot.slane %v1576, 2
    %v1580 = vadd.f32 %v1570, %v1578
    %v1582 = vrot.slane %v1316, 5
    %1583 = vrot.lane.b32.xlu0 %v1582, 120
    %v1584 = vpop.permute.xlu0 %1583
    %v1586 = vmul.f32 %v30, %v1584
    %v1588 = vrot.slane %v1586, 1
    %v1590 = vadd.f32 %v1560, %v1588
    %v1592 = vrot.slane %v1321, 5
    %1593 = vrot.lane.b32.xlu0 %v1592, 120
    %v1594 = vpop.permute.xlu0 %1593
    %v1596 = vmul.f32 %v30, %v1594
    %v1598 = vrot.slane %v1596, 2
    %v1600 = vadd.f32 %v1590, %v1598
    %v1601 = vmul.f32 %v1600, 0.5
    %v1602 = vsub.f32 %v1580, %v1601
    %v1604 = vrot.slane %v1602, 4
    %v1606 = vsub.f32 %v1179, %v1604
    %v1608 = vrot.slane %v1159, 7
    %1609 = vrot.lane.b32.xlu0 %v1608, 120
    %v1610 = vpop.permute.xlu0 %1609
    %v1612 = vsub.f32 %v1606, %v1610
    %v1613 = vrot.slane %v1316, 6
    %1614 = vrot.lane.b32.xlu0 %v1613, 120
    %v1615 = vpop.permute.xlu0 %1614
    %v1617 = vmul.f32 %v30, %v1615
    %v1618 = vadd.f32 %v1617, 0.0
    %v1620 = vrot.slane %v1432, 5
    %1621 = vrot.lane.b32.xlu0 %v1620, 112
    %v1622 = vpop.permute.xlu0 %1621
    %v1624 = vmul.f32 %v30, %v1622
    %v1626 = vrot.slane %v1624, 1
    %v1628 = vadd.f32 %v1618, %v1626
    %v1630 = vrot.slane %v1548, 4
    %1631 = vrot.lane.b32.xlu0 %v1630, 104
    %v1632 = vpop.permute.xlu0 %1631
    %v1634 = vmul.f32 %v30, %v1632
    %v1636 = vrot.slane %v1634, 2
    %v1638 = vadd.f32 %v1628, %v1636
    %v1639 = vrot.slane %v1427, 5
    %1640 = vrot.lane.b32.xlu0 %v1639, 112
    %v1641 = vpop.permute.xlu0 %1640
    %v1643 = vmul.f32 %v30, %v1641
    %v1644 = vadd.f32 %v1643, 0.0
    %v1645 = vadd.f32 %v1644, %v1626
    %v1647 = vrot.slane %v1437, 5
    %1648 = vrot.lane.b32.xlu0 %v1647, 112
    %v1649 = vpop.permute.xlu0 %1648
    %v1651 = vmul.f32 %v30, %v1649
    %v1653 = vrot.slane %v1651, 2
    %v1655 = vadd.f32 %v1645, %v1653
    %v1656 = vmul.f32 %v1655, 0.5
    %v1657 = vsub.f32 %v1638, %v1656
    %v1659 = vrot.slane %v1657, 3
    %v1661 = vsub.f32 %v1180, %v1659
    %v1662 = vrot.slane %v1159, 6
    %1663 = vrot.lane.b32.xlu0 %v1662, 112
    %v1664 = vpop.permute.xlu0 %1663
    %v1666 = vsub.f32 %v1661, %v1664
    %v1667 = vrot.slane %v1321, 7
    %1668 = vrot.lane.b32.xlu0 %v1667, 120
    %v1669 = vpop.permute.xlu0 %1668
    %v1671 = vmul.f32 %v30, %v1669
    %v1672 = vadd.f32 %v1671, 0.0
    %v1673 = vrot.slane %v1437, 6
    %1674 = vrot.lane.b32.xlu0 %v1673, 112
    %v1675 = vpop.permute.xlu0 %1674
    %v1677 = vmul.f32 %v30, %v1675
    %v1679 = vrot.slane %v1677, 1
    %v1681 = vadd.f32 %v1672, %v1679
    %v1683 = vrot.slane %v1553, 5
    %1684 = vrot.lane.b32.xlu0 %v1683, 104
    %v1685 = vpop.permute.xlu0 %1684
    %v1687 = vmul.f32 %v30, %v1685
    %v1689 = vrot.slane %v1687, 2
    %v1691 = vadd.f32 %v1681, %v1689
    %v1692 = vrot.slane %v1543, 5
    %1693 = vrot.lane.b32.xlu0 %v1692, 104
    %v1694 = vpop.permute.xlu0 %1693
    %v1696 = vmul.f32 %v30, %v1694
    %v1697 = vadd.f32 %v1696, 0.0
    %v1698 = vrot.slane %v1548, 5
    %1699 = vrot.lane.b32.xlu0 %v1698, 104
    %v1700 = vpop.permute.xlu0 %1699
    %v1702 = vmul.f32 %v30, %v1700
    %v1704 = vrot.slane %v1702, 1
    %v1706 = vadd.f32 %v1697, %v1704
    %v1707 = vadd.f32 %v1706, %v1689
    %v1708 = vmul.f32 %v1707, 0.5
    %v1709 = vsub.f32 %v1691, %v1708
    %v1711 = vrot.slane %v1709, 2
    %v1713 = vsub.f32 %v1180, %v1711
    %v1714 = vrot.slane %v1159, 5
    %1715 = vrot.lane.b32.xlu0 %v1714, 104
    %v1716 = vpop.permute.xlu0 %1715
    %v1718 = vsub.f32 %v1713, %v1716
    %v1719 = vrcp.pop %v1179
    %v1720 = vmul.f32 1.0, %v1719
    %v1722 = vrot.slane %v1720, 1
    %v1724 = vmul.f32 %v1612, %v1722
    %v1726 = vrot.slane %v1724, 4
    %v1728 = vmul.f32 %v1179, %v1726
    %v1730 = vrot.slane %v1728, 3
    %v1732 = vsub.f32 %v1666, %v1730
    %v1733 = vmul.f32 %v1732, %v1722
    %v1734 = vrot.slane %v1724, 3
    %v1736 = vmul.f32 %v1179, %v1734
    %v1738 = vrot.slane %v1736, 3
    %v1740 = vsub.f32 %v1718, %v1738
    %v1742 = vrot.slane %v1733, 3
    %v1744 = vmul.f32 %v1179, %v1742
    %v1746 = vrot.slane %v1744, 4
    %v1748 = vsub.f32 %v1740, %v1746
    %v1749 = vmul.f32 %v1748, %v1722
    %v1750 = vmul.f32 %v1749, %v1722
    %v1752 = vrot.slane %v1750, 4
    %v1754 = vmul.f32 %v1179, %v1752
    %v1756 = vrot.slane %v1754, 5
    %v1758 = vsub.f32 %v1733, %v1756
    %v1759 = vmul.f32 %v1758, %v1722
    %v1761 = vrot.slane %v1759, 5
    %v1763 = vmul.f32 %v1179, %v1761
    %v1765 = vrot.slane %v1763, 4
    %v1767 = vsub.f32 %v1724, %v1765
    %v1768 = vrot.slane %v1750, 5
    %v1770 = vmul.f32 %v1179, %v1768
    %v1772 = vrot.slane %v1770, 5
    %v1774 = vsub.f32 %v1767, %v1772
    %v1775 = vmul.f32 %v1774, %v1722
    %v1777 = vrot.slane %v1775, 7
    %v1779 = vrot.slane %v1759, 7
    %v1781 = vrot.slane %v1750, 7
    %vm1783 = vcmask 1040384
    %v1784 = vsel %vm1783, %v1777, %v1779
    %vm1785 = vcmask 1041408
    %v1786 = vsel %vm1785, %v1784, %v1781
    %vm1787 = vcmask 59392
    %1788 = vst.msk [vmem:[#allocation2] sm:$0x7] %vm1787, %v1786
    // Predicated region
    $region34: #{tpu_custom_call.1} parent=1 // pred_check
      _
    $region35: #{tpu_custom_call.1} parent=1 // pred_check_branch
      %1790 = sbr.rel (0) target = $region37
    $region36: #{tpu_custom_call.1} parent=1 // pred_region
      %s1792 = ssub.s32 64, 64
      %1793 = vsyncadd [#allocation3], %s1792
      %s1795 = sshll.u32 [#allocation2], 4
      %s1796 = int_to_ptr.vmem [resolvable:$true] %s1795
      %1798 = dma.vmem_to_hbm [thread:$0]  %s1796, 64, %s8, [#allocation3]
    $region37: #{tpu_custom_call.1} parent=1 // pred_fallthru
      _
    // Predicated region
    $region38: #{tpu_custom_call.1} parent=1 // pred_check
      _
    $region39: #{tpu_custom_call.1} parent=1 // pred_check_branch
      %1800 = sbr.rel (0) target = $region41
    $region40: #{tpu_custom_call.1} parent=1 // pred_region
      %1801 = dma.done [#allocation3], 64
    $region41: #{tpu_custom_call.1} parent=1 // pred_fallthru
      _
    %1802 = vsyncpa [#allocation3], 1

</llo_original>
